<compile_context>
chip_gen: v7x
topology: tpu7x:2x2x1
jax: 0.10.0
libtpu: 0.0.40
codegen_flags: <defaults>
</compile_context>

<pallas_src>
import functools

import jax
import jax.numpy as jnp
from jax import lax
from jax.experimental import pallas as pl
from jax.experimental.pallas import tpu as pltpu


def _layer_norm(y, gamma, beta, eps):
    mu = jnp.mean(y, axis=-1, keepdims=True)
    var = jnp.mean(jnp.square(y - mu), axis=-1, keepdims=True)
    return (y - mu) * lax.rsqrt(var + eps) * gamma + beta


def _encoder_layer_kernel(
    x_ref,
    wq_ref, bq_ref, wk_ref, bk_ref, wv_ref, bv_ref, wo_ref, bo_ref,
    g1_ref, be1_ref,
    w1_ref, b1_ref, w2_ref, b2_ref,
    g2_ref, be2_ref,
    out_ref,
    *, n_heads, scale, activation, eps):
    # x_ref block: (1, L, D)  -- one batch element, D on the lane axis.
    x = x_ref[0].astype(jnp.float32)                       # (L, D)
    L, D = x.shape
    d_k = D // n_heads

    def dense(v, w_ref, b_ref):
        return (jnp.dot(v, w_ref[...].astype(jnp.float32),
                        preferred_element_type=jnp.float32)
                + b_ref[...].astype(jnp.float32))          # bias (1, Dout)

    # ---- QKV projections (MXU) -------------------------------------------
    q = dense(x, wq_ref, bq_ref)                           # (L, D)
    k = dense(x, wk_ref, bk_ref)
    v = dense(x, wv_ref, bv_ref)

    # ---- multi-head scaled dot-product attention (static loop over heads) -
    head_outs = []
    for h in range(n_heads):
        lo, hi = h * d_k, (h + 1) * d_k
        qh = q[:, lo:hi]                                   # (L, d_k)
        kh = k[:, lo:hi]
        vh = v[:, lo:hi]
        # scores = qh @ kh^T  (contract the d_k axis, no explicit transpose)
        s = lax.dot_general(qh, kh, (((1,), (1,)), ((), ())),
                            preferred_element_type=jnp.float32) * scale
        m = jnp.max(s, axis=-1, keepdims=True)
        p = jnp.exp(s - m)
        attn = p / jnp.sum(p, axis=-1, keepdims=True)      # softmax
        head_outs.append(jnp.dot(attn, vh,
                                 preferred_element_type=jnp.float32))
    o = jnp.concatenate(head_outs, axis=-1)                # (L, D)

    # ---- output projection + residual + LayerNorm 1 ------------------------
    y = x + dense(o, wo_ref, bo_ref)                       # dropout == identity
    y = _layer_norm(y, g1_ref[...].astype(jnp.float32),
                    be1_ref[...].astype(jnp.float32), eps)

    # ---- position-wise FFN + residual + LayerNorm 2 -------------------------
    h1 = dense(y, w1_ref, b1_ref)                          # (L, d_ff)
    if activation == "relu":
        h1 = jnp.maximum(h1, 0.0)
    else:  # 'gelu' (exact, matches nn.GELU default)
        h1 = jax.nn.gelu(h1, approximate=False)
    z = y + dense(h1, w2_ref, b2_ref)                      # dropout == identity
    z = _layer_norm(z, g2_ref[...].astype(jnp.float32),
                    be2_ref[...].astype(jnp.float32), eps)

    out_ref[0] = z.astype(out_ref.dtype)


def encoder_layer(x, params, *, n_heads, activation="relu", eps=1e-5):
    """x: (B, L, D) -> (B, L, D).  params holds math-layout (in, out) weights."""
    B, L, D = x.shape
    d_ff = params["w1"].shape[1]
    scale = float(D // n_heads) ** -0.5

    def row(p):  # (D,) -> (1, D): keep every operand >= 2D / lane-aligned
        return p.reshape(1, -1)

    def full(shape):  # weight/bias resident in VMEM, fetched once
        return pl.BlockSpec(shape, lambda b, _n=len(shape): (0,) * _n)

    kernel = functools.partial(
        _encoder_layer_kernel,
        n_heads=n_heads, scale=scale, activation=activation, eps=eps)

    in_specs = [
        pl.BlockSpec((1, L, D), lambda b: (b, 0, 0)),      # x
        full((D, D)), full((1, D)),                        # W_Q, b_Q
        full((D, D)), full((1, D)),                        # W_K, b_K
        full((D, D)), full((1, D)),                        # W_V, b_V
        full((D, D)), full((1, D)),                        # W_O, b_O
        full((1, D)), full((1, D)),                        # LN1 gamma, beta
        full((D, d_ff)), full((1, d_ff)),                  # FFN W1, b1
        full((d_ff, D)), full((1, D)),                     # FFN W2, b2
        full((1, D)), full((1, D)),                        # LN2 gamma, beta
    ]

    return pl.pallas_call(
        kernel,
        out_shape=jax.ShapeDtypeStruct((B, L, D), x.dtype),
        grid_spec=pltpu.PrefetchScalarGridSpec(
            num_scalar_prefetch=0,
            grid=(B,),
            in_specs=in_specs,
            out_specs=pl.BlockSpec((1, L, D), lambda b: (b, 0, 0)),
        ),
        compiler_params=pltpu.CompilerParams(
            dimension_semantics=("parallel",),
            vmem_limit_bytes=64 << 20,
        ),
    )(
        x,
        params["wq"], row(params["bq"]),
        params["wk"], row(params["bk"]),
        params["wv"], row(params["bv"]),
        params["wo"], row(params["bo"]),
        row(params["g1"]), row(params["beta1"]),
        params["w1"], row(params["b1"]),
        params["w2"], row(params["b2"]),
        row(params["g2"]), row(params["beta2"]),
    )


# ----------------------------- pure-JAX reference -----------------------------
def _reference(x, params, n_heads, activation, eps=1e-5):
    B, L, D = x.shape
    d_k = D // n_heads
    scale = float(d_k) ** -0.5

    def dense(v, w, b):
        return v @ w + b

    q = dense(x, params["wq"], params["bq"])
    k = dense(x, params["wk"], params["bk"])
    v = dense(x, params["wv"], params["bv"])
    qh = q.reshape(B, L, n_heads, d_k).transpose(0, 2, 1, 3)
    kh = k.reshape(B, L, n_heads, d_k).transpose(0, 2, 1, 3)
    vh = v.reshape(B, L, n_heads, d_k).transpose(0, 2, 1, 3)
    s = jnp.einsum("bhqd,bhkd->bhqk", qh, kh) * scale
    a = jax.nn.softmax(s, axis=-1)
    o = jnp.einsum("bhqk,bhkd->bhqd", a, vh).transpose(0, 2, 1, 3).reshape(B, L, D)

    def ln(t, g, b):
        mu = jnp.mean(t, axis=-1, keepdims=True)
        var = jnp.mean(jnp.square(t - mu), axis=-1, keepdims=True)
        return (t - mu) * lax.rsqrt(var + eps) * g + b

    y = x + dense(o, params["wo"], params["bo"])
    y = ln(y, params["g1"], params["beta1"])
    h = dense(y, params["w1"], params["b1"])
    h = jnp.maximum(h, 0.0) if activation == "relu" else jax.nn.gelu(h, approximate=False)
    z = y + dense(h, params["w2"], params["b2"])
    z = ln(z, params["g2"], params["beta2"])
    return z


if __name__ == "__main__":
    key = jax.random.PRNGKey(0)
    # Small but lane-dense shapes: batch=2, seq=16, d_model=128, heads=4, d_ff=256
    B, L, D, H, FF = 2, 16, 128, 4, 256
    keys = jax.random.split(key, 20)

    def init(k, shape, s=0.05):
        return s * jax.random.normal(k, shape, dtype=jnp.float32)

    params = {
        "wq": init(keys[0], (D, D)), "bq": init(keys[1], (D,)),
        "wk": init(keys[2], (D, D)), "bk": init(keys[3], (D,)),
        "wv": init(keys[4], (D, D)), "bv": init(keys[5], (D,)),
        "wo": init(keys[6], (D, D)), "bo": init(keys[7], (D,)),
        "g1": 1.0 + init(keys[8], (D,), 0.1), "beta1": init(keys[9], (D,), 0.1),
        "w1": init(keys[10], (D, FF)), "b1": init(keys[11], (FF,)),
        "w2": init(keys[12], (FF, D)), "b2": init(keys[13], (D,)),
        "g2": 1.0 + init(keys[14], (D,), 0.1), "beta2": init(keys[15], (D,), 0.1),
    }
    x = jax.random.normal(keys[16], (B, L, D), dtype=jnp.float32)

    out = encoder_layer(x, params, n_heads=H, activation="relu")
    jax.block_until_ready(out)

    ref = _reference(x, params, H, "relu")
    assert out.shape == (B, L, D)
    assert jnp.allclose(out, ref, atol=2e-4, rtol=2e-4), "EncoderLayer mismatch"

    print("KERNEL_OK")
</pallas_src>

<mosaic_0001>
module attributes {stable_mosaic.version = 11 : i64} {
  func.func @_encoder_layer_kernel(%arg0: i32, %arg1: memref<1x16x128xf32, #tpu.memory_space<vmem>>, %arg2: memref<128x128xf32, #tpu.memory_space<vmem>>, %arg3: memref<1x128xf32, #tpu.memory_space<vmem>>, %arg4: memref<128x128xf32, #tpu.memory_space<vmem>>, %arg5: memref<1x128xf32, #tpu.memory_space<vmem>>, %arg6: memref<128x128xf32, #tpu.memory_space<vmem>>, %arg7: memref<1x128xf32, #tpu.memory_space<vmem>>, %arg8: memref<128x128xf32, #tpu.memory_space<vmem>>, %arg9: memref<1x128xf32, #tpu.memory_space<vmem>>, %arg10: memref<1x128xf32, #tpu.memory_space<vmem>>, %arg11: memref<1x128xf32, #tpu.memory_space<vmem>>, %arg12: memref<128x256xf32, #tpu.memory_space<vmem>>, %arg13: memref<1x256xf32, #tpu.memory_space<vmem>>, %arg14: memref<256x128xf32, #tpu.memory_space<vmem>>, %arg15: memref<1x128xf32, #tpu.memory_space<vmem>>, %arg16: memref<1x128xf32, #tpu.memory_space<vmem>>, %arg17: memref<1x128xf32, #tpu.memory_space<vmem>>, %arg18: memref<1x16x128xf32, #tpu.memory_space<vmem>>) attributes {dimension_semantics = [#tpu.dimension_semantics<parallel>], iteration_bounds = array<i64: 2>, scalar_prefetch = 0 : i64, scratch_operands = 0 : i64, tpu.core_type = #tpu.core_type<tc>, window_params = [{transform_indices = @transform_0, window_bounds = array<i64: 1, 16, 128>}, {pipeline_mode = #tpu.pipeline_mode<synchronous>, transform_indices = @transform_1, window_bounds = array<i64: 128, 128>}, {pipeline_mode = #tpu.pipeline_mode<synchronous>, transform_indices = @transform_2, window_bounds = array<i64: 1, 128>}, {pipeline_mode = #tpu.pipeline_mode<synchronous>, transform_indices = @transform_3, window_bounds = array<i64: 128, 128>}, {pipeline_mode = #tpu.pipeline_mode<synchronous>, transform_indices = @transform_4, window_bounds = array<i64: 1, 128>}, {pipeline_mode = #tpu.pipeline_mode<synchronous>, transform_indices = @transform_5, window_bounds = array<i64: 128, 128>}, {pipeline_mode = #tpu.pipeline_mode<synchronous>, transform_indices = @transform_6, window_bounds = array<i64: 1, 128>}, {pipeline_mode = #tpu.pipeline_mode<synchronous>, transform_indices = @transform_7, window_bounds = array<i64: 128, 128>}, {pipeline_mode = #tpu.pipeline_mode<synchronous>, transform_indices = @transform_8, window_bounds = array<i64: 1, 128>}, {pipeline_mode = #tpu.pipeline_mode<synchronous>, transform_indices = @transform_9, window_bounds = array<i64: 1, 128>}, {pipeline_mode = #tpu.pipeline_mode<synchronous>, transform_indices = @transform_10, window_bounds = array<i64: 1, 128>}, {pipeline_mode = #tpu.pipeline_mode<synchronous>, transform_indices = @transform_11, window_bounds = array<i64: 128, 256>}, {pipeline_mode = #tpu.pipeline_mode<synchronous>, transform_indices = @transform_12, window_bounds = array<i64: 1, 256>}, {pipeline_mode = #tpu.pipeline_mode<synchronous>, transform_indices = @transform_13, window_bounds = array<i64: 256, 128>}, {pipeline_mode = #tpu.pipeline_mode<synchronous>, transform_indices = @transform_14, window_bounds = array<i64: 1, 128>}, {pipeline_mode = #tpu.pipeline_mode<synchronous>, transform_indices = @transform_15, window_bounds = array<i64: 1, 128>}, {pipeline_mode = #tpu.pipeline_mode<synchronous>, transform_indices = @transform_16, window_bounds = array<i64: 1, 128>}, {transform_indices = @transform_17, window_bounds = array<i64: 1, 16, 128>}]} {
    %c0 = arith.constant 0 : index
    %c0_0 = arith.constant 0 : index
    %c0_1 = arith.constant 0 : index
    %0 = vector.load %arg1[%c0, %c0_0, %c0_1] : memref<1x16x128xf32, #tpu.memory_space<vmem>>, vector<1x16x128xf32>
    %1 = vector.shape_cast %0 : vector<1x16x128xf32> to vector<16x128xf32>
    %c0_2 = arith.constant 0 : index
    %c0_3 = arith.constant 0 : index
    %2 = vector.load %arg2[%c0_2, %c0_3] : memref<128x128xf32, #tpu.memory_space<vmem>>, vector<128x128xf32>
    %cst = arith.constant dense<0.000000e+00> : vector<16x128xf32>
    %3 = tpu.matmul %1, %2, %cst {dimension_numbers = #tpu.dot_dimension_numbers<[1], [0], [0], [1], [0, 0, 1, 1], [], []>} : vector<16x128xf32>, vector<128x128xf32>, vector<16x128xf32> -> vector<16x128xf32>
    %c0_4 = arith.constant 0 : index
    %c0_5 = arith.constant 0 : index
    %4 = vector.load %arg3[%c0_4, %c0_5] : memref<1x128xf32, #tpu.memory_space<vmem>>, vector<1x128xf32>
    %5 = vector.broadcast %4 : vector<1x128xf32> to vector<16x128xf32>
    %6 = arith.addf %3, %5 : vector<16x128xf32>
    %c0_6 = arith.constant 0 : index
    %c0_7 = arith.constant 0 : index
    %7 = vector.load %arg4[%c0_6, %c0_7] : memref<128x128xf32, #tpu.memory_space<vmem>>, vector<128x128xf32>
    %cst_8 = arith.constant dense<0.000000e+00> : vector<16x128xf32>
    %8 = tpu.matmul %1, %7, %cst_8 {dimension_numbers = #tpu.dot_dimension_numbers<[1], [0], [0], [1], [0, 0, 1, 1], [], []>} : vector<16x128xf32>, vector<128x128xf32>, vector<16x128xf32> -> vector<16x128xf32>
    %c0_9 = arith.constant 0 : index
    %c0_10 = arith.constant 0 : index
    %9 = vector.load %arg5[%c0_9, %c0_10] : memref<1x128xf32, #tpu.memory_space<vmem>>, vector<1x128xf32>
    %10 = vector.broadcast %9 : vector<1x128xf32> to vector<16x128xf32>
    %11 = arith.addf %8, %10 : vector<16x128xf32>
    %c0_11 = arith.constant 0 : index
    %c0_12 = arith.constant 0 : index
    %12 = vector.load %arg6[%c0_11, %c0_12] : memref<128x128xf32, #tpu.memory_space<vmem>>, vector<128x128xf32>
    %cst_13 = arith.constant dense<0.000000e+00> : vector<16x128xf32>
    %13 = tpu.matmul %1, %12, %cst_13 {dimension_numbers = #tpu.dot_dimension_numbers<[1], [0], [0], [1], [0, 0, 1, 1], [], []>} : vector<16x128xf32>, vector<128x128xf32>, vector<16x128xf32> -> vector<16x128xf32>
    %c0_14 = arith.constant 0 : index
    %c0_15 = arith.constant 0 : index
    %14 = vector.load %arg7[%c0_14, %c0_15] : memref<1x128xf32, #tpu.memory_space<vmem>>, vector<1x128xf32>
    %15 = vector.broadcast %14 : vector<1x128xf32> to vector<16x128xf32>
    %16 = arith.addf %13, %15 : vector<16x128xf32>
    %17 = vector.extract_strided_slice %6 {offsets = [0, 0], sizes = [16, 32], strides = [1, 1]} : vector<16x128xf32> to vector<16x32xf32>
    %18 = vector.extract_strided_slice %11 {offsets = [0, 0], sizes = [16, 32], strides = [1, 1]} : vector<16x128xf32> to vector<16x32xf32>
    %19 = vector.extract_strided_slice %16 {offsets = [0, 0], sizes = [16, 32], strides = [1, 1]} : vector<16x128xf32> to vector<16x32xf32>
    %cst_16 = arith.constant dense<0.000000e+00> : vector<16x16xf32>
    %20 = tpu.matmul %17, %18, %cst_16 {dimension_numbers = #tpu.dot_dimension_numbers<[1], [1], [0], [0], [0, 0, 1, 0], [], []>} : vector<16x32xf32>, vector<16x32xf32>, vector<16x16xf32> -> vector<16x16xf32>
    %cst_17 = arith.constant 0.176776692 : f32
    %21 = vector.broadcast %cst_17 : f32 to vector<16x16xf32>
    %22 = arith.mulf %20, %21 : vector<16x16xf32>
    %cst_18 = arith.constant dense<0xFF800000> : vector<16xf32>
    %23 = vector.multi_reduction <maximumf>, %22, %cst_18 [1] : vector<16x16xf32> to vector<16xf32>
    %24 = vector.shape_cast %23 : vector<16xf32> to vector<16x1xf32>
    %25 = vector.broadcast %24 : vector<16x1xf32> to vector<16x16xf32>
    %26 = arith.subf %22, %25 : vector<16x16xf32>
    %27 = math.exp %26 : vector<16x16xf32>
    %cst_19 = arith.constant dense<0.000000e+00> : vector<16xf32>
    %28 = vector.multi_reduction <add>, %27, %cst_19 [1] : vector<16x16xf32> to vector<16xf32>
    %29 = vector.shape_cast %28 : vector<16xf32> to vector<16x1xf32>
    %30 = vector.broadcast %29 : vector<16x1xf32> to vector<16x16xf32>
    %31 = arith.divf %27, %30 : vector<16x16xf32>
    %cst_20 = arith.constant dense<0.000000e+00> : vector<16x32xf32>
    %32 = tpu.matmul %31, %19, %cst_20 {dimension_numbers = #tpu.dot_dimension_numbers<[1], [0], [0], [1], [0, 0, 1, 1], [], []>} : vector<16x16xf32>, vector<16x32xf32>, vector<16x32xf32> -> vector<16x32xf32>
    %33 = vector.extract_strided_slice %6 {offsets = [0, 32], sizes = [16, 32], strides = [1, 1]} : vector<16x128xf32> to vector<16x32xf32>
    %34 = vector.extract_strided_slice %11 {offsets = [0, 32], sizes = [16, 32], strides = [1, 1]} : vector<16x128xf32> to vector<16x32xf32>
    %35 = vector.extract_strided_slice %16 {offsets = [0, 32], sizes = [16, 32], strides = [1, 1]} : vector<16x128xf32> to vector<16x32xf32>
    %cst_21 = arith.constant dense<0.000000e+00> : vector<16x16xf32>
    %36 = tpu.matmul %33, %34, %cst_21 {dimension_numbers = #tpu.dot_dimension_numbers<[1], [1], [0], [0], [0, 0, 1, 0], [], []>} : vector<16x32xf32>, vector<16x32xf32>, vector<16x16xf32> -> vector<16x16xf32>
    %cst_22 = arith.constant 0.176776692 : f32
    %37 = vector.broadcast %cst_22 : f32 to vector<16x16xf32>
    %38 = arith.mulf %36, %37 : vector<16x16xf32>
    %cst_23 = arith.constant dense<0xFF800000> : vector<16xf32>
    %39 = vector.multi_reduction <maximumf>, %38, %cst_23 [1] : vector<16x16xf32> to vector<16xf32>
    %40 = vector.shape_cast %39 : vector<16xf32> to vector<16x1xf32>
    %41 = vector.broadcast %40 : vector<16x1xf32> to vector<16x16xf32>
    %42 = arith.subf %38, %41 : vector<16x16xf32>
    %43 = math.exp %42 : vector<16x16xf32>
    %cst_24 = arith.constant dense<0.000000e+00> : vector<16xf32>
    %44 = vector.multi_reduction <add>, %43, %cst_24 [1] : vector<16x16xf32> to vector<16xf32>
    %45 = vector.shape_cast %44 : vector<16xf32> to vector<16x1xf32>
    %46 = vector.broadcast %45 : vector<16x1xf32> to vector<16x16xf32>
    %47 = arith.divf %43, %46 : vector<16x16xf32>
    %cst_25 = arith.constant dense<0.000000e+00> : vector<16x32xf32>
    %48 = tpu.matmul %47, %35, %cst_25 {dimension_numbers = #tpu.dot_dimension_numbers<[1], [0], [0], [1], [0, 0, 1, 1], [], []>} : vector<16x16xf32>, vector<16x32xf32>, vector<16x32xf32> -> vector<16x32xf32>
    %49 = vector.extract_strided_slice %6 {offsets = [0, 64], sizes = [16, 32], strides = [1, 1]} : vector<16x128xf32> to vector<16x32xf32>
    %50 = vector.extract_strided_slice %11 {offsets = [0, 64], sizes = [16, 32], strides = [1, 1]} : vector<16x128xf32> to vector<16x32xf32>
    %51 = vector.extract_strided_slice %16 {offsets = [0, 64], sizes = [16, 32], strides = [1, 1]} : vector<16x128xf32> to vector<16x32xf32>
    %cst_26 = arith.constant dense<0.000000e+00> : vector<16x16xf32>
    %52 = tpu.matmul %49, %50, %cst_26 {dimension_numbers = #tpu.dot_dimension_numbers<[1], [1], [0], [0], [0, 0, 1, 0], [], []>} : vector<16x32xf32>, vector<16x32xf32>, vector<16x16xf32> -> vector<16x16xf32>
    %cst_27 = arith.constant 0.176776692 : f32
    %53 = vector.broadcast %cst_27 : f32 to vector<16x16xf32>
    %54 = arith.mulf %52, %53 : vector<16x16xf32>
    %cst_28 = arith.constant dense<0xFF800000> : vector<16xf32>
    %55 = vector.multi_reduction <maximumf>, %54, %cst_28 [1] : vector<16x16xf32> to vector<16xf32>
    %56 = vector.shape_cast %55 : vector<16xf32> to vector<16x1xf32>
    %57 = vector.broadcast %56 : vector<16x1xf32> to vector<16x16xf32>
    %58 = arith.subf %54, %57 : vector<16x16xf32>
    %59 = math.exp %58 : vector<16x16xf32>
    %cst_29 = arith.constant dense<0.000000e+00> : vector<16xf32>
    %60 = vector.multi_reduction <add>, %59, %cst_29 [1] : vector<16x16xf32> to vector<16xf32>
    %61 = vector.shape_cast %60 : vector<16xf32> to vector<16x1xf32>
    %62 = vector.broadcast %61 : vector<16x1xf32> to vector<16x16xf32>
    %63 = arith.divf %59, %62 : vector<16x16xf32>
    %cst_30 = arith.constant dense<0.000000e+00> : vector<16x32xf32>
    %64 = tpu.matmul %63, %51, %cst_30 {dimension_numbers = #tpu.dot_dimension_numbers<[1], [0], [0], [1], [0, 0, 1, 1], [], []>} : vector<16x16xf32>, vector<16x32xf32>, vector<16x32xf32> -> vector<16x32xf32>
    %65 = vector.extract_strided_slice %6 {offsets = [0, 96], sizes = [16, 32], strides = [1, 1]} : vector<16x128xf32> to vector<16x32xf32>
    %66 = vector.extract_strided_slice %11 {offsets = [0, 96], sizes = [16, 32], strides = [1, 1]} : vector<16x128xf32> to vector<16x32xf32>
    %67 = vector.extract_strided_slice %16 {offsets = [0, 96], sizes = [16, 32], strides = [1, 1]} : vector<16x128xf32> to vector<16x32xf32>
    %cst_31 = arith.constant dense<0.000000e+00> : vector<16x16xf32>
    %68 = tpu.matmul %65, %66, %cst_31 {dimension_numbers = #tpu.dot_dimension_numbers<[1], [1], [0], [0], [0, 0, 1, 0], [], []>} : vector<16x32xf32>, vector<16x32xf32>, vector<16x16xf32> -> vector<16x16xf32>
    %cst_32 = arith.constant 0.176776692 : f32
    %69 = vector.broadcast %cst_32 : f32 to vector<16x16xf32>
    %70 = arith.mulf %68, %69 : vector<16x16xf32>
    %cst_33 = arith.constant dense<0xFF800000> : vector<16xf32>
    %71 = vector.multi_reduction <maximumf>, %70, %cst_33 [1] : vector<16x16xf32> to vector<16xf32>
    %72 = vector.shape_cast %71 : vector<16xf32> to vector<16x1xf32>
    %73 = vector.broadcast %72 : vector<16x1xf32> to vector<16x16xf32>
    %74 = arith.subf %70, %73 : vector<16x16xf32>
    %75 = math.exp %74 : vector<16x16xf32>
    %cst_34 = arith.constant dense<0.000000e+00> : vector<16xf32>
    %76 = vector.multi_reduction <add>, %75, %cst_34 [1] : vector<16x16xf32> to vector<16xf32>
    %77 = vector.shape_cast %76 : vector<16xf32> to vector<16x1xf32>
    %78 = vector.broadcast %77 : vector<16x1xf32> to vector<16x16xf32>
    %79 = arith.divf %75, %78 : vector<16x16xf32>
    %cst_35 = arith.constant dense<0.000000e+00> : vector<16x32xf32>
    %80 = tpu.matmul %79, %67, %cst_35 {dimension_numbers = #tpu.dot_dimension_numbers<[1], [0], [0], [1], [0, 0, 1, 1], [], []>} : vector<16x16xf32>, vector<16x32xf32>, vector<16x32xf32> -> vector<16x32xf32>
    %81 = tpu.concatenate %32, %48, %64, %80 in 1 : vector<16x32xf32>, vector<16x32xf32>, vector<16x32xf32>, vector<16x32xf32> -> vector<16x128xf32>
    %c0_36 = arith.constant 0 : index
    %c0_37 = arith.constant 0 : index
    %82 = vector.load %arg8[%c0_36, %c0_37] : memref<128x128xf32, #tpu.memory_space<vmem>>, vector<128x128xf32>
    %cst_38 = arith.constant dense<0.000000e+00> : vector<16x128xf32>
    %83 = tpu.matmul %81, %82, %cst_38 {dimension_numbers = #tpu.dot_dimension_numbers<[1], [0], [0], [1], [0, 0, 1, 1], [], []>} : vector<16x128xf32>, vector<128x128xf32>, vector<16x128xf32> -> vector<16x128xf32>
    %c0_39 = arith.constant 0 : index
    %c0_40 = arith.constant 0 : index
    %84 = vector.load %arg9[%c0_39, %c0_40] : memref<1x128xf32, #tpu.memory_space<vmem>>, vector<1x128xf32>
    %85 = vector.broadcast %84 : vector<1x128xf32> to vector<16x128xf32>
    %86 = arith.addf %83, %85 : vector<16x128xf32>
    %87 = arith.addf %1, %86 : vector<16x128xf32>
    %c0_41 = arith.constant 0 : index
    %c0_42 = arith.constant 0 : index
    %88 = vector.load %arg10[%c0_41, %c0_42] : memref<1x128xf32, #tpu.memory_space<vmem>>, vector<1x128xf32>
    %c0_43 = arith.constant 0 : index
    %c0_44 = arith.constant 0 : index
    %89 = vector.load %arg11[%c0_43, %c0_44] : memref<1x128xf32, #tpu.memory_space<vmem>>, vector<1x128xf32>
    %cst_45 = arith.constant dense<0.000000e+00> : vector<16xf32>
    %90 = vector.multi_reduction <add>, %87, %cst_45 [1] : vector<16x128xf32> to vector<16xf32>
    %91 = vector.shape_cast %90 : vector<16xf32> to vector<16x1xf32>
    %cst_46 = arith.constant 1.280000e+02 : f32
    %92 = vector.broadcast %cst_46 : f32 to vector<16x1xf32>
    %93 = arith.divf %91, %92 : vector<16x1xf32>
    %94 = vector.broadcast %93 : vector<16x1xf32> to vector<16x128xf32>
    %95 = arith.subf %87, %94 : vector<16x128xf32>
    %96 = arith.mulf %95, %95 : vector<16x128xf32>
    %cst_47 = arith.constant dense<0.000000e+00> : vector<16xf32>
    %97 = vector.multi_reduction <add>, %96, %cst_47 [1] : vector<16x128xf32> to vector<16xf32>
    %98 = vector.shape_cast %97 : vector<16xf32> to vector<16x1xf32>
    %cst_48 = arith.constant 1.280000e+02 : f32
    %99 = vector.broadcast %cst_48 : f32 to vector<16x1xf32>
    %100 = arith.divf %98, %99 : vector<16x1xf32>
    %101 = vector.broadcast %93 : vector<16x1xf32> to vector<16x128xf32>
    %102 = arith.subf %87, %101 : vector<16x128xf32>
    %cst_49 = arith.constant 9.99999974E-6 : f32
    %103 = vector.broadcast %cst_49 : f32 to vector<16x1xf32>
    %104 = arith.addf %100, %103 : vector<16x1xf32>
    %105 = math.rsqrt %104 : vector<16x1xf32>
    %106 = vector.broadcast %105 : vector<16x1xf32> to vector<16x128xf32>
    %107 = arith.mulf %102, %106 : vector<16x128xf32>
    %108 = vector.broadcast %88 : vector<1x128xf32> to vector<16x128xf32>
    %109 = arith.mulf %107, %108 : vector<16x128xf32>
    %110 = vector.broadcast %89 : vector<1x128xf32> to vector<16x128xf32>
    %111 = arith.addf %109, %110 : vector<16x128xf32>
    %c0_50 = arith.constant 0 : index
    %c0_51 = arith.constant 0 : index
    %112 = vector.load %arg12[%c0_50, %c0_51] : memref<128x256xf32, #tpu.memory_space<vmem>>, vector<128x256xf32>
    %cst_52 = arith.constant dense<0.000000e+00> : vector<16x256xf32>
    %113 = tpu.matmul %111, %112, %cst_52 {dimension_numbers = #tpu.dot_dimension_numbers<[1], [0], [0], [1], [0, 0, 1, 1], [], []>} : vector<16x128xf32>, vector<128x256xf32>, vector<16x256xf32> -> vector<16x256xf32>
    %c0_53 = arith.constant 0 : index
    %c0_54 = arith.constant 0 : index
    %114 = vector.load %arg13[%c0_53, %c0_54] : memref<1x256xf32, #tpu.memory_space<vmem>>, vector<1x256xf32>
    %115 = vector.broadcast %114 : vector<1x256xf32> to vector<16x256xf32>
    %116 = arith.addf %113, %115 : vector<16x256xf32>
    %cst_55 = arith.constant 0.000000e+00 : f32
    %117 = vector.broadcast %cst_55 : f32 to vector<16x256xf32>
    %118 = arith.maximumf %116, %117 : vector<16x256xf32>
    %c0_56 = arith.constant 0 : index
    %c0_57 = arith.constant 0 : index
    %119 = vector.load %arg14[%c0_56, %c0_57] : memref<256x128xf32, #tpu.memory_space<vmem>>, vector<256x128xf32>
    %cst_58 = arith.constant dense<0.000000e+00> : vector<16x128xf32>
    %120 = tpu.matmul %118, %119, %cst_58 {dimension_numbers = #tpu.dot_dimension_numbers<[1], [0], [0], [1], [0, 0, 1, 1], [], []>} : vector<16x256xf32>, vector<256x128xf32>, vector<16x128xf32> -> vector<16x128xf32>
    %c0_59 = arith.constant 0 : index
    %c0_60 = arith.constant 0 : index
    %121 = vector.load %arg15[%c0_59, %c0_60] : memref<1x128xf32, #tpu.memory_space<vmem>>, vector<1x128xf32>
    %122 = vector.broadcast %121 : vector<1x128xf32> to vector<16x128xf32>
    %123 = arith.addf %120, %122 : vector<16x128xf32>
    %124 = arith.addf %111, %123 : vector<16x128xf32>
    %c0_61 = arith.constant 0 : index
    %c0_62 = arith.constant 0 : index
    %125 = vector.load %arg16[%c0_61, %c0_62] : memref<1x128xf32, #tpu.memory_space<vmem>>, vector<1x128xf32>
    %c0_63 = arith.constant 0 : index
    %c0_64 = arith.constant 0 : index
    %126 = vector.load %arg17[%c0_63, %c0_64] : memref<1x128xf32, #tpu.memory_space<vmem>>, vector<1x128xf32>
    %cst_65 = arith.constant dense<0.000000e+00> : vector<16xf32>
    %127 = vector.multi_reduction <add>, %124, %cst_65 [1] : vector<16x128xf32> to vector<16xf32>
    %128 = vector.shape_cast %127 : vector<16xf32> to vector<16x1xf32>
    %cst_66 = arith.constant 1.280000e+02 : f32
    %129 = vector.broadcast %cst_66 : f32 to vector<16x1xf32>
    %130 = arith.divf %128, %129 : vector<16x1xf32>
    %131 = vector.broadcast %130 : vector<16x1xf32> to vector<16x128xf32>
    %132 = arith.subf %124, %131 : vector<16x128xf32>
    %133 = arith.mulf %132, %132 : vector<16x128xf32>
    %cst_67 = arith.constant dense<0.000000e+00> : vector<16xf32>
    %134 = vector.multi_reduction <add>, %133, %cst_67 [1] : vector<16x128xf32> to vector<16xf32>
    %135 = vector.shape_cast %134 : vector<16xf32> to vector<16x1xf32>
    %cst_68 = arith.constant 1.280000e+02 : f32
    %136 = vector.broadcast %cst_68 : f32 to vector<16x1xf32>
    %137 = arith.divf %135, %136 : vector<16x1xf32>
    %138 = vector.broadcast %130 : vector<16x1xf32> to vector<16x128xf32>
    %139 = arith.subf %124, %138 : vector<16x128xf32>
    %cst_69 = arith.constant 9.99999974E-6 : f32
    %140 = vector.broadcast %cst_69 : f32 to vector<16x1xf32>
    %141 = arith.addf %137, %140 : vector<16x1xf32>
    %142 = math.rsqrt %141 : vector<16x1xf32>
    %143 = vector.broadcast %142 : vector<16x1xf32> to vector<16x128xf32>
    %144 = arith.mulf %139, %143 : vector<16x128xf32>
    %145 = vector.broadcast %125 : vector<1x128xf32> to vector<16x128xf32>
    %146 = arith.mulf %144, %145 : vector<16x128xf32>
    %147 = vector.broadcast %126 : vector<1x128xf32> to vector<16x128xf32>
    %148 = arith.addf %146, %147 : vector<16x128xf32>
    %c0_70 = arith.constant 0 : index
    %c0_71 = arith.constant 0 : index
    %c0_72 = arith.constant 0 : index
    %149 = vector.load %arg18[%c0_70, %c0_71, %c0_72] : memref<1x16x128xf32, #tpu.memory_space<vmem>>, vector<1x16x128xf32>
    %150 = vector.shape_cast %149 : vector<1x16x128xf32> to vector<16x128xf32>
    %151 = vector.shape_cast %148 : vector<16x128xf32> to vector<1x16x128xf32>
    tpu.vector_store %arg18[%c0_70, %c0_71, %c0_72], %151 {strides = array<i32>} : memref<1x16x128xf32, #tpu.memory_space<vmem>>, vector<1x16x128xf32>,
    return
  }
  func.func @transform_0(%arg0: i32) -> (i32, i32, i32) {
    %c0_i32 = arith.constant 0 : i32
    %c0_i32_0 = arith.constant 0 : i32
    %c0_i32_1 = arith.constant 0 : i32
    return %arg0, %c0_i32, %c0_i32_0 : i32, i32, i32
  }
  func.func @transform_1(%arg0: i32) -> (i32, i32) {
    %c0_i32 = arith.constant 0 : i32
    %c0_i32_0 = arith.constant 0 : i32
    %c0_i32_1 = arith.constant 0 : i32
    return %c0_i32, %c0_i32_0 : i32, i32
  }
  func.func @transform_2(%arg0: i32) -> (i32, i32) {
    %c0_i32 = arith.constant 0 : i32
    %c0_i32_0 = arith.constant 0 : i32
    %c0_i32_1 = arith.constant 0 : i32
    return %c0_i32, %c0_i32_0 : i32, i32
  }
  func.func @transform_3(%arg0: i32) -> (i32, i32) {
    %c0_i32 = arith.constant 0 : i32
    %c0_i32_0 = arith.constant 0 : i32
    %c0_i32_1 = arith.constant 0 : i32
    return %c0_i32, %c0_i32_0 : i32, i32
  }
  func.func @transform_4(%arg0: i32) -> (i32, i32) {
    %c0_i32 = arith.constant 0 : i32
    %c0_i32_0 = arith.constant 0 : i32
    %c0_i32_1 = arith.constant 0 : i32
    return %c0_i32, %c0_i32_0 : i32, i32
  }
  func.func @transform_5(%arg0: i32) -> (i32, i32) {
    %c0_i32 = arith.constant 0 : i32
    %c0_i32_0 = arith.constant 0 : i32
    %c0_i32_1 = arith.constant 0 : i32
    return %c0_i32, %c0_i32_0 : i32, i32
  }
  func.func @transform_6(%arg0: i32) -> (i32, i32) {
    %c0_i32 = arith.constant 0 : i32
    %c0_i32_0 = arith.constant 0 : i32
    %c0_i32_1 = arith.constant 0 : i32
    return %c0_i32, %c0_i32_0 : i32, i32
  }
  func.func @transform_7(%arg0: i32) -> (i32, i32) {
    %c0_i32 = arith.constant 0 : i32
    %c0_i32_0 = arith.constant 0 : i32
    %c0_i32_1 = arith.constant 0 : i32
    return %c0_i32, %c0_i32_0 : i32, i32
  }
  func.func @transform_8(%arg0: i32) -> (i32, i32) {
    %c0_i32 = arith.constant 0 : i32
    %c0_i32_0 = arith.constant 0 : i32
    %c0_i32_1 = arith.constant 0 : i32
    return %c0_i32, %c0_i32_0 : i32, i32
  }
  func.func @transform_9(%arg0: i32) -> (i32, i32) {
    %c0_i32 = arith.constant 0 : i32
    %c0_i32_0 = arith.constant 0 : i32
    %c0_i32_1 = arith.constant 0 : i32
    return %c0_i32, %c0_i32_0 : i32, i32
  }
  func.func @transform_10(%arg0: i32) -> (i32, i32) {
    %c0_i32 = arith.constant 0 : i32
    %c0_i32_0 = arith.constant 0 : i32
    %c0_i32_1 = arith.constant 0 : i32
    return %c0_i32, %c0_i32_0 : i32, i32
  }
  func.func @transform_11(%arg0: i32) -> (i32, i32) {
    %c0_i32 = arith.constant 0 : i32
    %c0_i32_0 = arith.constant 0 : i32
    %c0_i32_1 = arith.constant 0 : i32
    return %c0_i32, %c0_i32_0 : i32, i32
  }
  func.func @transform_12(%arg0: i32) -> (i32, i32) {
    %c0_i32 = arith.constant 0 : i32
    %c0_i32_0 = arith.constant 0 : i32
    %c0_i32_1 = arith.constant 0 : i32
    return %c0_i32, %c0_i32_0 : i32, i32
  }
  func.func @transform_13(%arg0: i32) -> (i32, i32) {
    %c0_i32 = arith.constant 0 : i32
    %c0_i32_0 = arith.constant 0 : i32
    %c0_i32_1 = arith.constant 0 : i32
    return %c0_i32, %c0_i32_0 : i32, i32
  }
  func.func @transform_14(%arg0: i32) -> (i32, i32) {
    %c0_i32 = arith.constant 0 : i32
    %c0_i32_0 = arith.constant 0 : i32
    %c0_i32_1 = arith.constant 0 : i32
    return %c0_i32, %c0_i32_0 : i32, i32
  }
  func.func @transform_15(%arg0: i32) -> (i32, i32) {
    %c0_i32 = arith.constant 0 : i32
    %c0_i32_0 = arith.constant 0 : i32
    %c0_i32_1 = arith.constant 0 : i32
    return %c0_i32, %c0_i32_0 : i32, i32
  }
  func.func @transform_16(%arg0: i32) -> (i32, i32) {
    %c0_i32 = arith.constant 0 : i32
    %c0_i32_0 = arith.constant 0 : i32
    %c0_i32_1 = arith.constant 0 : i32
    return %c0_i32, %c0_i32_0 : i32, i32
  }
  func.func @transform_17(%arg0: i32) -> (i32, i32, i32) {
    %c0_i32 = arith.constant 0 : i32
    %c0_i32_0 = arith.constant 0 : i32
    %c0_i32_1 = arith.constant 0 : i32
    return %arg0, %c0_i32, %c0_i32_0 : i32, i32, i32
  }
}

</mosaic_0001>

<llo_original>
// kernel: tpu_custom_call.1
$region0: #{tpu_custom_call.1}
  #allocation0 [shape = 'u32[]', space=smem, size = 0x4, offset = 0x4, fixed_abs, tag = 'smem constant byte address 0x4 - core index']
  #allocation1 [shape = 'u32[144,128]{1,0:T(1,128)}', space=vmem, size = 0x12000, scoped, tag = 'internal scratch']
  %s0 = inlined_call_operand.hbm [shape: f32[2,16,128], index: 0, kind: input, shape index: {}]
  %s1 = inlined_call_operand.hbm [shape: f32[128,128], index: 1, kind: input, shape index: {}]
  %s2 = inlined_call_operand.hbm [shape: f32[1,128], index: 2, kind: input, shape index: {}]
  %s3 = inlined_call_operand.hbm [shape: f32[128,128], index: 3, kind: input, shape index: {}]
  %s4 = inlined_call_operand.hbm [shape: f32[1,128], index: 4, kind: input, shape index: {}]
  %s5 = inlined_call_operand.hbm [shape: f32[128,128], index: 5, kind: input, shape index: {}]
  %s6 = inlined_call_operand.hbm [shape: f32[1,128], index: 6, kind: input, shape index: {}]
  %s7 = inlined_call_operand.hbm [shape: f32[128,128], index: 7, kind: input, shape index: {}]
  %s8 = inlined_call_operand.hbm [shape: f32[1,128], index: 8, kind: input, shape index: {}]
  %s9 = inlined_call_operand.hbm [shape: f32[1,128], index: 9, kind: input, shape index: {}]
  %s10 = inlined_call_operand.hbm [shape: f32[1,128], index: 10, kind: input, shape index: {}]
  %s11 = inlined_call_operand.hbm [shape: f32[128,256], index: 11, kind: input, shape index: {}]
  %s12 = inlined_call_operand.hbm [shape: f32[1,256], index: 12, kind: input, shape index: {}]
  %s13 = inlined_call_operand.hbm [shape: f32[256,128], index: 13, kind: input, shape index: {}]
  %s14 = inlined_call_operand.hbm [shape: f32[1,128], index: 14, kind: input, shape index: {}]
  %s15 = inlined_call_operand.hbm [shape: f32[1,128], index: 15, kind: input, shape index: {}]
  %s16 = inlined_call_operand.hbm [shape: f32[1,128], index: 16, kind: input, shape index: {}]
  %s17 = inlined_call_operand.hbm [shape: f32[2,16,128], index: 17, kind: output, shape index: {}]
  %s18 = sld [smem:[#allocation0]]
  $region169: #{tpu_custom_call.1} parent=0
    _
  %s20 = ssub.s32 1, %s18
  %s21 = scalar_select 0, %s20, %s18
  $region1: #{tpu_custom_call.1} parent=0
    #allocation2 [shape = 'u8[16384]{0}', space=vmem, size = 0x4000, scoped, tag = 'input window, operand 0']
    #allocation3 [shape = 's32[2]{0}', space=sflag, size = 0x8, scoped, tag = 'scoped memory for tpu_custom_call.1']
    #allocation4 [shape = 's32[2]{0}', space=sflag, size = 0x8, scoped, tag = 'scoped memory for tpu_custom_call.1']
    #allocation5 [shape = 'u8[65536]{0}', space=vmem, size = 0x10000, scoped, tag = 'input window, operand 1, single buffered']
    #allocation6 [shape = 's32[1]{0}', space=sflag, size = 0x4, scoped, tag = 'scoped memory for tpu_custom_call.1']
    #allocation7 [shape = 'u8[512]{0}', space=vmem, size = 0x400, scoped, tag = 'input window, operand 2, single buffered']
    #allocation8 [shape = 'u8[65536]{0}', space=vmem, size = 0x10000, scoped, tag = 'input window, operand 3, single buffered']
    #allocation9 [shape = 's32[1]{0}', space=sflag, size = 0x4, scoped, tag = 'scoped memory for tpu_custom_call.1']
    #allocation10 [shape = 'u8[512]{0}', space=vmem, size = 0x400, scoped, tag = 'input window, operand 4, single buffered']
    #allocation11 [shape = 'u8[65536]{0}', space=vmem, size = 0x10000, scoped, tag = 'input window, operand 5, single buffered']
    #allocation12 [shape = 's32[1]{0}', space=sflag, size = 0x4, scoped, tag = 'scoped memory for tpu_custom_call.1']
    #allocation13 [shape = 'u8[512]{0}', space=vmem, size = 0x400, scoped, tag = 'input window, operand 6, single buffered']
    #allocation14 [shape = 'u8[65536]{0}', space=vmem, size = 0x10000, scoped, tag = 'input window, operand 7, single buffered']
    #allocation15 [shape = 's32[1]{0}', space=sflag, size = 0x4, scoped, tag = 'scoped memory for tpu_custom_call.1']
    #allocation16 [shape = 'u8[512]{0}', space=vmem, size = 0x400, scoped, tag = 'input window, operand 8, single buffered']
    #allocation17 [shape = 'u8[512]{0}', space=vmem, size = 0x400, scoped, tag = 'input window, operand 9, single buffered']
    #allocation18 [shape = 's32[1]{0}', space=sflag, size = 0x4, scoped, tag = 'scoped memory for tpu_custom_call.1']
    #allocation19 [shape = 'u8[512]{0}', space=vmem, size = 0x400, scoped, tag = 'input window, operand 10, single buffered']
    #allocation20 [shape = 'u8[131072]{0}', space=vmem, size = 0x20000, scoped, tag = 'input window, operand 11, single buffered']
    #allocation21 [shape = 's32[1]{0}', space=sflag, size = 0x4, scoped, tag = 'scoped memory for tpu_custom_call.1']
    #allocation22 [shape = 'u8[1024]{0}', space=vmem, size = 0x400, scoped, tag = 'input window, operand 12, single buffered']
    #allocation23 [shape = 'u8[131072]{0}', space=vmem, size = 0x20000, scoped, tag = 'input window, operand 13, single buffered']
    #allocation24 [shape = 's32[1]{0}', space=sflag, size = 0x4, scoped, tag = 'scoped memory for tpu_custom_call.1']
    #allocation25 [shape = 'u8[512]{0}', space=vmem, size = 0x400, scoped, tag = 'input window, operand 14, single buffered']
    #allocation26 [shape = 'u8[512]{0}', space=vmem, size = 0x400, scoped, tag = 'input window, operand 15, single buffered']
    #allocation27 [shape = 's32[1]{0}', space=sflag, size = 0x4, scoped, tag = 'scoped memory for tpu_custom_call.1']
    #allocation28 [shape = 'u8[512]{0}', space=vmem, size = 0x400, scoped, tag = 'input window, operand 16, single buffered']
    #allocation29 [shape = 'u8[16384]{0}', space=vmem, size = 0x4000, scoped, tag = 'output window, operand 0']
    %22 = vsyncpa [#allocation3], 0
    %s23 = scalar_lea.sflag [#allocation3], 1
    %24 = vsyncpa %s23, 0
    %25 = vsyncpa [#allocation6], 0
    %26 = vsyncpa [#allocation9], 0
    %27 = vsyncpa [#allocation12], 0
    %28 = vsyncpa [#allocation15], 0
    %29 = vsyncpa [#allocation18], 0
    %30 = vsyncpa [#allocation21], 0
    %31 = vsyncpa [#allocation24], 0
    %32 = vsyncpa [#allocation27], 0
    %33 = vsyncpa [#allocation4], 0
    %s34 = scalar_lea.sflag [#allocation4], 1
    %35 = vsyncpa %s34, 0
    loop: start=0, step=1, limit=4
    $region2: #{tpu_custom_call.1} parent=1 // loop_pre_header
      _
    $region3: #{tpu_custom_call.1} parent=1 // loop_header
      %s37 = sphi 0, %s41
      %p38 = scmp.ge.s32.totalorder %s37, 4
      %s47 = sphi 0, %s49
      %s50 = sphi 0, %s47
      %s51 = sphi 0, %s50
      %s67 = sphi 0, %s51
      %s71 = sphi 0, %s71
      %s73 = sphi 0, %s71
      %s74 = sphi 0, %s73
      %s88 = sphi 0, %s74
      %s92 = sphi 0, %s92
      %s94 = sphi 0, %s92
      %s95 = sphi 0, %s94
      %s109 = sphi 0, %s95
      %s113 = sphi 0, %s113
      %s115 = sphi 0, %s113
      %s116 = sphi 0, %s115
      %s130 = sphi 0, %s116
      %s134 = sphi 0, %s134
      %s136 = sphi 0, %s134
      %s137 = sphi 0, %s136
      %s151 = sphi 0, %s137
      %s155 = sphi 0, %s155
      %s157 = sphi 0, %s155
      %s158 = sphi 0, %s157
      %s172 = sphi 0, %s158
      %s176 = sphi 0, %s176
      %s178 = sphi 0, %s176
      %s179 = sphi 0, %s178
      %s193 = sphi 0, %s179
      %s197 = sphi 0, %s197
      %s199 = sphi 0, %s197
      %s200 = sphi 0, %s199
      %s214 = sphi 0, %s200
      %s218 = sphi 0, %s218
      %s220 = sphi 0, %s218
      %s221 = sphi 0, %s220
      %s235 = sphi 0, %s221
      %s239 = sphi 0, %s239
      %s241 = sphi 0, %s239
      %s242 = sphi 0, %s241
      %s256 = sphi 0, %s242
      %s260 = sphi 0, %s260
      %s262 = sphi 0, %s260
      %s263 = sphi 0, %s262
      %s277 = sphi 0, %s263
      %s281 = sphi 0, %s281
      %s283 = sphi 0, %s281
      %s284 = sphi 0, %s283
      %s298 = sphi 0, %s284
      %s302 = sphi 0, %s302
      %s304 = sphi 0, %s302
      %s305 = sphi 0, %s304
      %s319 = sphi 0, %s305
      %s323 = sphi 0, %s323
      %s325 = sphi 0, %s323
      %s326 = sphi 0, %s325
      %s340 = sphi 0, %s326
      %s344 = sphi 0, %s344
      %s346 = sphi 0, %s344
      %s347 = sphi 0, %s346
      %s361 = sphi 0, %s347
      %s365 = sphi 0, %s365
      %s367 = sphi 0, %s365
      %s368 = sphi 0, %s367
      %s382 = sphi 0, %s368
      %s386 = sphi 0, %s386
      %s388 = sphi 0, %s386
      %s389 = sphi 0, %s388
      %s403 = sphi 0, %s389
      %s409 = sphi 0, %s411
      %s412 = sphi 0, %s409
      %s413 = sphi 0, %s412
      %s429 = sphi 0, %s413
    $region4: #{tpu_custom_call.1} parent=1 // loop_header_branch
      %40 = sbr.rel (%p38) target = $region8
    $region5: #{tpu_custom_call.1} parent=1 // loop_body
      %s42 = ssub.s32 %s37, 1
      %s43 = ssub.s32 %s37, 2
      %s44 = sadd.s32 %s37, 1
      %s45 = ssub.s32 %s37, %s44
      %p46 = scmp.eq.s32.totalorder %s45, 0
      %s48 = sadd.s32 %s47, 1
      %s49 = scalar_select %p46, %s47, %s48
      %p52 = pneg %p46
      %p53 = scmp.eq.s32.totalorder %s37, 1
      %p54 = por %p52, %p53
      %p55 = scmp.ne.s32.totalorder %s47, %s50
      %p56 = scmp.eq.s32.totalorder %s37, 0
      %p57 = por %p55, %p56
      %p58 = scmp.ne.s32.totalorder %s47, %s50
      %p59 = scmp.eq.s32.totalorder %s42, 1
      %p60 = por %p58, %p59
      %p61 = scmp.ne.s32.totalorder %s50, %s51
      %p62 = scmp.eq.s32.totalorder %s42, 0
      %p63 = por %p61, %p62
      %p64 = scmp.ne.s32.totalorder %s50, %s51
      %p65 = scmp.eq.s32.totalorder %s43, 1
      %p66 = por %p64, %p65
      %p68 = scmp.ne.s32.totalorder %s51, %s67
      %p69 = scmp.eq.s32.totalorder %s43, 0
      %p70 = por %p68, %p69
      %s72 = sadd.s32 %s71, 1
      %p75 = scmp.eq.s32.totalorder %s37, 1
      %p76 = scmp.ne.s32.totalorder %s71, %s73
      %p77 = scmp.eq.s32.totalorder %s37, 0
      %p78 = por %p76, %p77
      %p79 = scmp.ne.s32.totalorder %s71, %s73
      %p80 = scmp.eq.s32.totalorder %s42, 1
      %p81 = por %p79, %p80
      %p82 = scmp.ne.s32.totalorder %s73, %s74
      %p83 = scmp.eq.s32.totalorder %s42, 0
      %p84 = por %p82, %p83
      %p85 = scmp.ne.s32.totalorder %s73, %s74
      %p86 = scmp.eq.s32.totalorder %s43, 1
      %p87 = por %p85, %p86
      %p89 = scmp.ne.s32.totalorder %s74, %s88
      %p90 = scmp.eq.s32.totalorder %s43, 0
      %p91 = por %p89, %p90
      %s93 = sadd.s32 %s92, 1
      %p96 = scmp.eq.s32.totalorder %s37, 1
      %p97 = scmp.ne.s32.totalorder %s92, %s94
      %p98 = scmp.eq.s32.totalorder %s37, 0
      %p99 = por %p97, %p98
      %p100 = scmp.ne.s32.totalorder %s92, %s94
      %p101 = scmp.eq.s32.totalorder %s42, 1
      %p102 = por %p100, %p101
      %p103 = scmp.ne.s32.totalorder %s94, %s95
      %p104 = scmp.eq.s32.totalorder %s42, 0
      %p105 = por %p103, %p104
      %p106 = scmp.ne.s32.totalorder %s94, %s95
      %p107 = scmp.eq.s32.totalorder %s43, 1
      %p108 = por %p106, %p107
      %p110 = scmp.ne.s32.totalorder %s95, %s109
      %p111 = scmp.eq.s32.totalorder %s43, 0
      %p112 = por %p110, %p111
      %s114 = sadd.s32 %s113, 1
      %p117 = scmp.eq.s32.totalorder %s37, 1
      %p118 = scmp.ne.s32.totalorder %s113, %s115
      %p119 = scmp.eq.s32.totalorder %s37, 0
      %p120 = por %p118, %p119
      %p121 = scmp.ne.s32.totalorder %s113, %s115
      %p122 = scmp.eq.s32.totalorder %s42, 1
      %p123 = por %p121, %p122
      %p124 = scmp.ne.s32.totalorder %s115, %s116
      %p125 = scmp.eq.s32.totalorder %s42, 0
      %p126 = por %p124, %p125
      %p127 = scmp.ne.s32.totalorder %s115, %s116
      %p128 = scmp.eq.s32.totalorder %s43, 1
      %p129 = por %p127, %p128
      %p131 = scmp.ne.s32.totalorder %s116, %s130
      %p132 = scmp.eq.s32.totalorder %s43, 0
      %p133 = por %p131, %p132
      %s135 = sadd.s32 %s134, 1
      %p138 = scmp.eq.s32.totalorder %s37, 1
      %p139 = scmp.ne.s32.totalorder %s134, %s136
      %p140 = scmp.eq.s32.totalorder %s37, 0
      %p141 = por %p139, %p140
      %p142 = scmp.ne.s32.totalorder %s134, %s136
      %p143 = scmp.eq.s32.totalorder %s42, 1
      %p144 = por %p142, %p143
      %p145 = scmp.ne.s32.totalorder %s136, %s137
      %p146 = scmp.eq.s32.totalorder %s42, 0
      %p147 = por %p145, %p146
      %p148 = scmp.ne.s32.totalorder %s136, %s137
      %p149 = scmp.eq.s32.totalorder %s43, 1
      %p150 = por %p148, %p149
      %p152 = scmp.ne.s32.totalorder %s137, %s151
      %p153 = scmp.eq.s32.totalorder %s43, 0
      %p154 = por %p152, %p153
      %s156 = sadd.s32 %s155, 1
      %p159 = scmp.eq.s32.totalorder %s37, 1
      %p160 = scmp.ne.s32.totalorder %s155, %s157
      %p161 = scmp.eq.s32.totalorder %s37, 0
      %p162 = por %p160, %p161
      %p163 = scmp.ne.s32.totalorder %s155, %s157
      %p164 = scmp.eq.s32.totalorder %s42, 1
      %p165 = por %p163, %p164
      %p166 = scmp.ne.s32.totalorder %s157, %s158
      %p167 = scmp.eq.s32.totalorder %s42, 0
      %p168 = por %p166, %p167
      %p169 = scmp.ne.s32.totalorder %s157, %s158
      %p170 = scmp.eq.s32.totalorder %s43, 1
      %p171 = por %p169, %p170
      %p173 = scmp.ne.s32.totalorder %s158, %s172
      %p174 = scmp.eq.s32.totalorder %s43, 0
      %p175 = por %p173, %p174
      %s177 = sadd.s32 %s176, 1
      %p180 = scmp.eq.s32.totalorder %s37, 1
      %p181 = scmp.ne.s32.totalorder %s176, %s178
      %p182 = scmp.eq.s32.totalorder %s37, 0
      %p183 = por %p181, %p182
      %p184 = scmp.ne.s32.totalorder %s176, %s178
      %p185 = scmp.eq.s32.totalorder %s42, 1
      %p186 = por %p184, %p185
      %p187 = scmp.ne.s32.totalorder %s178, %s179
      %p188 = scmp.eq.s32.totalorder %s42, 0
      %p189 = por %p187, %p188
      %p190 = scmp.ne.s32.totalorder %s178, %s179
      %p191 = scmp.eq.s32.totalorder %s43, 1
      %p192 = por %p190, %p191
      %p194 = scmp.ne.s32.totalorder %s179, %s193
      %p195 = scmp.eq.s32.totalorder %s43, 0
      %p196 = por %p194, %p195
      %s198 = sadd.s32 %s197, 1
      %p201 = scmp.eq.s32.totalorder %s37, 1
      %p202 = scmp.ne.s32.totalorder %s197, %s199
      %p203 = scmp.eq.s32.totalorder %s37, 0
      %p204 = por %p202, %p203
      %p205 = scmp.ne.s32.totalorder %s197, %s199
      %p206 = scmp.eq.s32.totalorder %s42, 1
      %p207 = por %p205, %p206
      %p208 = scmp.ne.s32.totalorder %s199, %s200
      %p209 = scmp.eq.s32.totalorder %s42, 0
      %p210 = por %p208, %p209
      %p211 = scmp.ne.s32.totalorder %s199, %s200
      %p212 = scmp.eq.s32.totalorder %s43, 1
      %p213 = por %p211, %p212
      %p215 = scmp.ne.s32.totalorder %s200, %s214
      %p216 = scmp.eq.s32.totalorder %s43, 0
      %p217 = por %p215, %p216
      %s219 = sadd.s32 %s218, 1
      %p222 = scmp.eq.s32.totalorder %s37, 1
      %p223 = scmp.ne.s32.totalorder %s218, %s220
      %p224 = scmp.eq.s32.totalorder %s37, 0
      %p225 = por %p223, %p224
      %p226 = scmp.ne.s32.totalorder %s218, %s220
      %p227 = scmp.eq.s32.totalorder %s42, 1
      %p228 = por %p226, %p227
      %p229 = scmp.ne.s32.totalorder %s220, %s221
      %p230 = scmp.eq.s32.totalorder %s42, 0
      %p231 = por %p229, %p230
      %p232 = scmp.ne.s32.totalorder %s220, %s221
      %p233 = scmp.eq.s32.totalorder %s43, 1
      %p234 = por %p232, %p233
      %p236 = scmp.ne.s32.totalorder %s221, %s235
      %p237 = scmp.eq.s32.totalorder %s43, 0
      %p238 = por %p236, %p237
      %s240 = sadd.s32 %s239, 1
      %p243 = scmp.eq.s32.totalorder %s37, 1
      %p244 = scmp.ne.s32.totalorder %s239, %s241
      %p245 = scmp.eq.s32.totalorder %s37, 0
      %p246 = por %p244, %p245
      %p247 = scmp.ne.s32.totalorder %s239, %s241
      %p248 = scmp.eq.s32.totalorder %s42, 1
      %p249 = por %p247, %p248
      %p250 = scmp.ne.s32.totalorder %s241, %s242
      %p251 = scmp.eq.s32.totalorder %s42, 0
      %p252 = por %p250, %p251
      %p253 = scmp.ne.s32.totalorder %s241, %s242
      %p254 = scmp.eq.s32.totalorder %s43, 1
      %p255 = por %p253, %p254
      %p257 = scmp.ne.s32.totalorder %s242, %s256
      %p258 = scmp.eq.s32.totalorder %s43, 0
      %p259 = por %p257, %p258
      %s261 = sadd.s32 %s260, 1
      %p264 = scmp.eq.s32.totalorder %s37, 1
      %p265 = scmp.ne.s32.totalorder %s260, %s262
      %p266 = scmp.eq.s32.totalorder %s37, 0
      %p267 = por %p265, %p266
      %p268 = scmp.ne.s32.totalorder %s260, %s262
      %p269 = scmp.eq.s32.totalorder %s42, 1
      %p270 = por %p268, %p269
      %p271 = scmp.ne.s32.totalorder %s262, %s263
      %p272 = scmp.eq.s32.totalorder %s42, 0
      %p273 = por %p271, %p272
      %p274 = scmp.ne.s32.totalorder %s262, %s263
      %p275 = scmp.eq.s32.totalorder %s43, 1
      %p276 = por %p274, %p275
      %p278 = scmp.ne.s32.totalorder %s263, %s277
      %p279 = scmp.eq.s32.totalorder %s43, 0
      %p280 = por %p278, %p279
      %s282 = sadd.s32 %s281, 1
      %p285 = scmp.eq.s32.totalorder %s37, 1
      %p286 = scmp.ne.s32.totalorder %s281, %s283
      %p287 = scmp.eq.s32.totalorder %s37, 0
      %p288 = por %p286, %p287
      %p289 = scmp.ne.s32.totalorder %s281, %s283
      %p290 = scmp.eq.s32.totalorder %s42, 1
      %p291 = por %p289, %p290
      %p292 = scmp.ne.s32.totalorder %s283, %s284
      %p293 = scmp.eq.s32.totalorder %s42, 0
      %p294 = por %p292, %p293
      %p295 = scmp.ne.s32.totalorder %s283, %s284
      %p296 = scmp.eq.s32.totalorder %s43, 1
      %p297 = por %p295, %p296
      %p299 = scmp.ne.s32.totalorder %s284, %s298
      %p300 = scmp.eq.s32.totalorder %s43, 0
      %p301 = por %p299, %p300
      %s303 = sadd.s32 %s302, 1
      %p306 = scmp.eq.s32.totalorder %s37, 1
      %p307 = scmp.ne.s32.totalorder %s302, %s304
      %p308 = scmp.eq.s32.totalorder %s37, 0
      %p309 = por %p307, %p308
      %p310 = scmp.ne.s32.totalorder %s302, %s304
      %p311 = scmp.eq.s32.totalorder %s42, 1
      %p312 = por %p310, %p311
      %p313 = scmp.ne.s32.totalorder %s304, %s305
      %p314 = scmp.eq.s32.totalorder %s42, 0
      %p315 = por %p313, %p314
      %p316 = scmp.ne.s32.totalorder %s304, %s305
      %p317 = scmp.eq.s32.totalorder %s43, 1
      %p318 = por %p316, %p317
      %p320 = scmp.ne.s32.totalorder %s305, %s319
      %p321 = scmp.eq.s32.totalorder %s43, 0
      %p322 = por %p320, %p321
      %s324 = sadd.s32 %s323, 1
      %p327 = scmp.eq.s32.totalorder %s37, 1
      %p328 = scmp.ne.s32.totalorder %s323, %s325
      %p329 = scmp.eq.s32.totalorder %s37, 0
      %p330 = por %p328, %p329
      %p331 = scmp.ne.s32.totalorder %s323, %s325
      %p332 = scmp.eq.s32.totalorder %s42, 1
      %p333 = por %p331, %p332
      %p334 = scmp.ne.s32.totalorder %s325, %s326
      %p335 = scmp.eq.s32.totalorder %s42, 0
      %p336 = por %p334, %p335
      %p337 = scmp.ne.s32.totalorder %s325, %s326
      %p338 = scmp.eq.s32.totalorder %s43, 1
      %p339 = por %p337, %p338
      %p341 = scmp.ne.s32.totalorder %s326, %s340
      %p342 = scmp.eq.s32.totalorder %s43, 0
      %p343 = por %p341, %p342
      %s345 = sadd.s32 %s344, 1
      %p348 = scmp.eq.s32.totalorder %s37, 1
      %p349 = scmp.ne.s32.totalorder %s344, %s346
      %p350 = scmp.eq.s32.totalorder %s37, 0
      %p351 = por %p349, %p350
      %p352 = scmp.ne.s32.totalorder %s344, %s346
      %p353 = scmp.eq.s32.totalorder %s42, 1
      %p354 = por %p352, %p353
      %p355 = scmp.ne.s32.totalorder %s346, %s347
      %p356 = scmp.eq.s32.totalorder %s42, 0
      %p357 = por %p355, %p356
      %p358 = scmp.ne.s32.totalorder %s346, %s347
      %p359 = scmp.eq.s32.totalorder %s43, 1
      %p360 = por %p358, %p359
      %p362 = scmp.ne.s32.totalorder %s347, %s361
      %p363 = scmp.eq.s32.totalorder %s43, 0
      %p364 = por %p362, %p363
      %s366 = sadd.s32 %s365, 1
      %p369 = scmp.eq.s32.totalorder %s37, 1
      %p370 = scmp.ne.s32.totalorder %s365, %s367
      %p371 = scmp.eq.s32.totalorder %s37, 0
      %p372 = por %p370, %p371
      %p373 = scmp.ne.s32.totalorder %s365, %s367
      %p374 = scmp.eq.s32.totalorder %s42, 1
      %p375 = por %p373, %p374
      %p376 = scmp.ne.s32.totalorder %s367, %s368
      %p377 = scmp.eq.s32.totalorder %s42, 0
      %p378 = por %p376, %p377
      %p379 = scmp.ne.s32.totalorder %s367, %s368
      %p380 = scmp.eq.s32.totalorder %s43, 1
      %p381 = por %p379, %p380
      %p383 = scmp.ne.s32.totalorder %s368, %s382
      %p384 = scmp.eq.s32.totalorder %s43, 0
      %p385 = por %p383, %p384
      %s387 = sadd.s32 %s386, 1
      %p390 = scmp.eq.s32.totalorder %s37, 1
      %p391 = scmp.ne.s32.totalorder %s386, %s388
      %p392 = scmp.eq.s32.totalorder %s37, 0
      %p393 = por %p391, %p392
      %p394 = scmp.ne.s32.totalorder %s386, %s388
      %p395 = scmp.eq.s32.totalorder %s42, 1
      %p396 = por %p394, %p395
      %p397 = scmp.ne.s32.totalorder %s388, %s389
      %p398 = scmp.eq.s32.totalorder %s42, 0
      %p399 = por %p397, %p398
      %p400 = scmp.ne.s32.totalorder %s388, %s389
      %p401 = scmp.eq.s32.totalorder %s43, 1
      %p402 = por %p400, %p401
      %p404 = scmp.ne.s32.totalorder %s389, %s403
      %p405 = scmp.eq.s32.totalorder %s43, 0
      %p406 = por %p404, %p405
      %s407 = ssub.s32 %s37, %s44
      %p408 = scmp.eq.s32.totalorder %s407, 0
      %s410 = sadd.s32 %s409, 1
      %s411 = scalar_select %p408, %s409, %s410
      %p414 = pneg %p408
      %p415 = scmp.eq.s32.totalorder %s37, 1
      %p416 = por %p414, %p415
      %p417 = scmp.ne.s32.totalorder %s409, %s412
      %p418 = scmp.eq.s32.totalorder %s37, 0
      %p419 = por %p417, %p418
      %p420 = scmp.ne.s32.totalorder %s409, %s412
      %p421 = scmp.eq.s32.totalorder %s42, 1
      %p422 = por %p420, %p421
      %p423 = scmp.ne.s32.totalorder %s412, %s413
      %p424 = scmp.eq.s32.totalorder %s42, 0
      %p425 = por %p423, %p424
      %p426 = scmp.ne.s32.totalorder %s412, %s413
      %p427 = scmp.eq.s32.totalorder %s43, 1
      %p428 = por %p426, %p427
      %p430 = scmp.ne.s32.totalorder %s413, %s429
      %p431 = scmp.eq.s32.totalorder %s43, 0
      %p432 = por %p430, %p431
      %p433 = scmp.le.s32.totalorder 1, %s37
      %p434 = scmp.lt.s32.totalorder %s37, 3
      %p435 = pnand %p433, %p434
      %p436 = pneg %p435
      // Predicated region
      $region9: #{tpu_custom_call.1} parent=5 // pred_check
        _
      $region10: #{tpu_custom_call.1} parent=5 // pred_check_branch
        %438 = sbr.rel (%p435) target = $region12
      $region11: #{tpu_custom_call.1} parent=5 // pred_region
        %s439 = ssub.s32 %s37, 1
        // Predicated region
        $region13: #{tpu_custom_call.1} parent=11 // pred_check
          %p440 = pneg %p84
        $region14: #{tpu_custom_call.1} parent=11 // pred_check_branch
          %442 = sbr.rel (%p440) target = $region16
        $region15: #{tpu_custom_call.1} parent=11 // pred_region
          %s444 = ssub.s32 2048, 2048
          %445 = vsyncadd [#allocation6], %s444
          %s446 = sshll.u32 [#allocation5], 4
          %s447 = int_to_ptr.vmem [resolvable:$true] %s446
          %452 = dma.hbm_to_vmem [thread:$0]  %s1, 2048, %s447, [#allocation6], 128, 128, 8
        $region16: #{tpu_custom_call.1} parent=11 // pred_fallthru
          _
        // Predicated region
        $region17: #{tpu_custom_call.1} parent=11 // pred_check
          %p453 = pneg %p105
        $region18: #{tpu_custom_call.1} parent=11 // pred_check_branch
          %455 = sbr.rel (%p453) target = $region20
        $region19: #{tpu_custom_call.1} parent=11 // pred_region
          %s457 = ssub.s32 16, 16
          %458 = vsyncadd [#allocation6], %s457
          %s460 = sshll.u32 [#allocation7], 4
          %s461 = int_to_ptr.vmem [resolvable:$true] %s460
          %463 = dma.hbm_to_vmem [thread:$0]  %s2, 16, %s461, [#allocation6]
        $region20: #{tpu_custom_call.1} parent=11 // pred_fallthru
          _
        // Predicated region
        $region21: #{tpu_custom_call.1} parent=11 // pred_check
          %p464 = pneg %p126
        $region22: #{tpu_custom_call.1} parent=11 // pred_check_branch
          %466 = sbr.rel (%p464) target = $region24
        $region23: #{tpu_custom_call.1} parent=11 // pred_region
          %s468 = ssub.s32 2048, 2048
          %469 = vsyncadd [#allocation9], %s468
          %s470 = sshll.u32 [#allocation8], 4
          %s471 = int_to_ptr.vmem [resolvable:$true] %s470
          %476 = dma.hbm_to_vmem [thread:$0]  %s3, 2048, %s471, [#allocation9], 128, 128, 8
        $region24: #{tpu_custom_call.1} parent=11 // pred_fallthru
          _
        // Predicated region
        $region25: #{tpu_custom_call.1} parent=11 // pred_check
          %p477 = pneg %p147
        $region26: #{tpu_custom_call.1} parent=11 // pred_check_branch
          %479 = sbr.rel (%p477) target = $region28
        $region27: #{tpu_custom_call.1} parent=11 // pred_region
          %s481 = ssub.s32 16, 16
          %482 = vsyncadd [#allocation9], %s481
          %s484 = sshll.u32 [#allocation10], 4
          %s485 = int_to_ptr.vmem [resolvable:$true] %s484
          %487 = dma.hbm_to_vmem [thread:$0]  %s4, 16, %s485, [#allocation9]
        $region28: #{tpu_custom_call.1} parent=11 // pred_fallthru
          _
        // Predicated region
        $region29: #{tpu_custom_call.1} parent=11 // pred_check
          %p488 = pneg %p168
        $region30: #{tpu_custom_call.1} parent=11 // pred_check_branch
          %490 = sbr.rel (%p488) target = $region32
        $region31: #{tpu_custom_call.1} parent=11 // pred_region
          %s492 = ssub.s32 2048, 2048
          %493 = vsyncadd [#allocation12], %s492
          %s494 = sshll.u32 [#allocation11], 4
          %s495 = int_to_ptr.vmem [resolvable:$true] %s494
          %500 = dma.hbm_to_vmem [thread:$0]  %s5, 2048, %s495, [#allocation12], 128, 128, 8
        $region32: #{tpu_custom_call.1} parent=11 // pred_fallthru
          _
        // Predicated region
        $region33: #{tpu_custom_call.1} parent=11 // pred_check
          %p501 = pneg %p189
        $region34: #{tpu_custom_call.1} parent=11 // pred_check_branch
          %503 = sbr.rel (%p501) target = $region36
        $region35: #{tpu_custom_call.1} parent=11 // pred_region
          %s505 = ssub.s32 16, 16
          %506 = vsyncadd [#allocation12], %s505
          %s508 = sshll.u32 [#allocation13], 4
          %s509 = int_to_ptr.vmem [resolvable:$true] %s508
          %511 = dma.hbm_to_vmem [thread:$0]  %s6, 16, %s509, [#allocation12]
        $region36: #{tpu_custom_call.1} parent=11 // pred_fallthru
          _
        // Predicated region
        $region37: #{tpu_custom_call.1} parent=11 // pred_check
          %p512 = pneg %p210
        $region38: #{tpu_custom_call.1} parent=11 // pred_check_branch
          %514 = sbr.rel (%p512) target = $region40
        $region39: #{tpu_custom_call.1} parent=11 // pred_region
          %s516 = ssub.s32 2048, 2048
          %517 = vsyncadd [#allocation15], %s516
          %s518 = sshll.u32 [#allocation14], 4
          %s519 = int_to_ptr.vmem [resolvable:$true] %s518
          %524 = dma.hbm_to_vmem [thread:$0]  %s7, 2048, %s519, [#allocation15], 128, 128, 8
        $region40: #{tpu_custom_call.1} parent=11 // pred_fallthru
          _
        // Predicated region
        $region41: #{tpu_custom_call.1} parent=11 // pred_check
          %p525 = pneg %p231
        $region42: #{tpu_custom_call.1} parent=11 // pred_check_branch
          %527 = sbr.rel (%p525) target = $region44
        $region43: #{tpu_custom_call.1} parent=11 // pred_region
          %s529 = ssub.s32 16, 16
          %530 = vsyncadd [#allocation15], %s529
          %s532 = sshll.u32 [#allocation16], 4
          %s533 = int_to_ptr.vmem [resolvable:$true] %s532
          %535 = dma.hbm_to_vmem [thread:$0]  %s8, 16, %s533, [#allocation15]
        $region44: #{tpu_custom_call.1} parent=11 // pred_fallthru
          _
        // Predicated region
        $region45: #{tpu_custom_call.1} parent=11 // pred_check
          %p536 = pneg %p252
        $region46: #{tpu_custom_call.1} parent=11 // pred_check_branch
          %538 = sbr.rel (%p536) target = $region48
        $region47: #{tpu_custom_call.1} parent=11 // pred_region
          %s540 = ssub.s32 16, 16
          %541 = vsyncadd [#allocation18], %s540
          %s543 = sshll.u32 [#allocation17], 4
          %s544 = int_to_ptr.vmem [resolvable:$true] %s543
          %546 = dma.hbm_to_vmem [thread:$0]  %s9, 16, %s544, [#allocation18]
        $region48: #{tpu_custom_call.1} parent=11 // pred_fallthru
          _
        // Predicated region
        $region49: #{tpu_custom_call.1} parent=11 // pred_check
          %p547 = pneg %p273
        $region50: #{tpu_custom_call.1} parent=11 // pred_check_branch
          %549 = sbr.rel (%p547) target = $region52
        $region51: #{tpu_custom_call.1} parent=11 // pred_region
          %s551 = ssub.s32 16, 16
          %552 = vsyncadd [#allocation18], %s551
          %s554 = sshll.u32 [#allocation19], 4
          %s555 = int_to_ptr.vmem [resolvable:$true] %s554
          %557 = dma.hbm_to_vmem [thread:$0]  %s10, 16, %s555, [#allocation18]
        $region52: #{tpu_custom_call.1} parent=11 // pred_fallthru
          _
        // Predicated region
        $region53: #{tpu_custom_call.1} parent=11 // pred_check
          %p558 = pneg %p294
        $region54: #{tpu_custom_call.1} parent=11 // pred_check_branch
          %560 = sbr.rel (%p558) target = $region56
        $region55: #{tpu_custom_call.1} parent=11 // pred_region
          %s562 = ssub.s32 4096, 4096
          %563 = vsyncadd [#allocation21], %s562
          %s564 = sshll.u32 [#allocation20], 4
          %s565 = int_to_ptr.vmem [resolvable:$true] %s564
          %570 = dma.hbm_to_vmem [thread:$0]  %s11, 4096, %s565, [#allocation21], 256, 256, 16
        $region56: #{tpu_custom_call.1} parent=11 // pred_fallthru
          _
        // Predicated region
        $region57: #{tpu_custom_call.1} parent=11 // pred_check
          %p571 = pneg %p315
        $region58: #{tpu_custom_call.1} parent=11 // pred_check_branch
          %573 = sbr.rel (%p571) target = $region60
        $region59: #{tpu_custom_call.1} parent=11 // pred_region
          %s575 = ssub.s32 32, 32
          %576 = vsyncadd [#allocation21], %s575
          %s578 = sshll.u32 [#allocation22], 4
          %s579 = int_to_ptr.vmem [resolvable:$true] %s578
          %581 = dma.hbm_to_vmem [thread:$0]  %s12, 32, %s579, [#allocation21]
        $region60: #{tpu_custom_call.1} parent=11 // pred_fallthru
          _
        // Predicated region
        $region61: #{tpu_custom_call.1} parent=11 // pred_check
          %p582 = pneg %p336
        $region62: #{tpu_custom_call.1} parent=11 // pred_check_branch
          %584 = sbr.rel (%p582) target = $region64
        $region63: #{tpu_custom_call.1} parent=11 // pred_region
          %s586 = ssub.s32 4096, 4096
          %587 = vsyncadd [#allocation24], %s586
          %s588 = sshll.u32 [#allocation23], 4
          %s589 = int_to_ptr.vmem [resolvable:$true] %s588
          %594 = dma.hbm_to_vmem [thread:$0]  %s13, 4096, %s589, [#allocation24], 128, 128, 8
        $region64: #{tpu_custom_call.1} parent=11 // pred_fallthru
          _
        // Predicated region
        $region65: #{tpu_custom_call.1} parent=11 // pred_check
          %p595 = pneg %p357
        $region66: #{tpu_custom_call.1} parent=11 // pred_check_branch
          %597 = sbr.rel (%p595) target = $region68
        $region67: #{tpu_custom_call.1} parent=11 // pred_region
          %s599 = ssub.s32 16, 16
          %600 = vsyncadd [#allocation24], %s599
          %s602 = sshll.u32 [#allocation25], 4
          %s603 = int_to_ptr.vmem [resolvable:$true] %s602
          %605 = dma.hbm_to_vmem [thread:$0]  %s14, 16, %s603, [#allocation24]
        $region68: #{tpu_custom_call.1} parent=11 // pred_fallthru
          _
        // Predicated region
        $region69: #{tpu_custom_call.1} parent=11 // pred_check
          %p606 = pneg %p378
        $region70: #{tpu_custom_call.1} parent=11 // pred_check_branch
          %608 = sbr.rel (%p606) target = $region72
        $region71: #{tpu_custom_call.1} parent=11 // pred_region
          %s610 = ssub.s32 16, 16
          %611 = vsyncadd [#allocation27], %s610
          %s613 = sshll.u32 [#allocation26], 4
          %s614 = int_to_ptr.vmem [resolvable:$true] %s613
          %616 = dma.hbm_to_vmem [thread:$0]  %s15, 16, %s614, [#allocation27]
        $region72: #{tpu_custom_call.1} parent=11 // pred_fallthru
          _
        // Predicated region
        $region73: #{tpu_custom_call.1} parent=11 // pred_check
          %p617 = pneg %p399
        $region74: #{tpu_custom_call.1} parent=11 // pred_check_branch
          %619 = sbr.rel (%p617) target = $region76
        $region75: #{tpu_custom_call.1} parent=11 // pred_region
          %s621 = ssub.s32 16, 16
          %622 = vsyncadd [#allocation27], %s621
          %s624 = sshll.u32 [#allocation28], 4
          %s625 = int_to_ptr.vmem [resolvable:$true] %s624
          %627 = dma.hbm_to_vmem [thread:$0]  %s16, 16, %s625, [#allocation27]
        $region76: #{tpu_custom_call.1} parent=11 // pred_fallthru
          _
      $region12: #{tpu_custom_call.1} parent=5 // pred_fallthru
        _
      %p628 = scmp.lt.s32.totalorder %s37, 2
      // Predicated region
      $region77: #{tpu_custom_call.1} parent=5 // pred_check
        %p629 = pneg %p628
      $region78: #{tpu_custom_call.1} parent=5 // pred_check_branch
        %631 = sbr.rel (%p629) target = $region80
      $region79: #{tpu_custom_call.1} parent=5 // pred_region
        // Predicated region
        $region81: #{tpu_custom_call.1} parent=79 // pred_check
          %p632 = pneg %p57
        $region82: #{tpu_custom_call.1} parent=79 // pred_check_branch
          %634 = sbr.rel (%p632) target = $region84
        $region83: #{tpu_custom_call.1} parent=79 // pred_region
          %s635 = sand.u32 %s47, 1
          %s636 = scalar_lea.sflag [#allocation3], %s635
          %s637 = sand.u32 %s47, 1
          %s638 = smul.addr %s637, 16
          %s639 = scalar_lea.vmem [#allocation2], %s638
          %s641 = ssub.s32 256, 256
          %642 = vsyncadd %s636, %s641
          %s643 = smul.addr %s37, 2
          %s644 = smul.addr %s643, 128
          %s645 = scalar_lea.hbm %s0, %s644
          %s646 = sshll.u32 %s639, 4
          %s647 = int_to_ptr.vmem [resolvable:$true] %s646
          %652 = dma.hbm_to_vmem [thread:$0]  %s645, 256, %s647, %s636, 128, 128, 8
        $region84: #{tpu_custom_call.1} parent=79 // pred_fallthru
          _
      $region80: #{tpu_custom_call.1} parent=5 // pred_fallthru
        _
      %p653 = scmp.le.s32.totalorder 1, %s37
      %p654 = scmp.lt.s32.totalorder %s37, 3
      %p655 = pnand %p653, %p654
      %p656 = pneg %p655
      // Predicated region
      $region85: #{tpu_custom_call.1} parent=5 // pred_check
        _
      $region86: #{tpu_custom_call.1} parent=5 // pred_check_branch
        %658 = sbr.rel (%p655) target = $region88
      $region87: #{tpu_custom_call.1} parent=5 // pred_region
        %s659 = ssub.s32 %s37, 1
        %s660 = sand.u32 %s50, 1
        %s661 = scalar_lea.sflag [#allocation3], %s660
        %s662 = sand.u32 %s50, 1
        %s663 = smul.addr %s662, 16
        %s664 = scalar_lea.vmem [#allocation2], %s663
        // Predicated region
        $region89: #{tpu_custom_call.1} parent=87 // pred_check
          %p665 = pneg %p63
        $region90: #{tpu_custom_call.1} parent=87 // pred_check_branch
          %667 = sbr.rel (%p665) target = $region92
        $region91: #{tpu_custom_call.1} parent=87 // pred_region
          %668 = dma.done %s661, 256
        $region92: #{tpu_custom_call.1} parent=87 // pred_fallthru
          _
        // Predicated region
        $region93: #{tpu_custom_call.1} parent=87 // pred_check
          %p669 = pneg %p84
        $region94: #{tpu_custom_call.1} parent=87 // pred_check_branch
          %671 = sbr.rel (%p669) target = $region96
        $region95: #{tpu_custom_call.1} parent=87 // pred_region
          %672 = dma.done [#allocation6], 2048
        $region96: #{tpu_custom_call.1} parent=87 // pred_fallthru
          _
        // Predicated region
        $region97: #{tpu_custom_call.1} parent=87 // pred_check
          %p673 = pneg %p105
        $region98: #{tpu_custom_call.1} parent=87 // pred_check_branch
          %675 = sbr.rel (%p673) target = $region100
        $region99: #{tpu_custom_call.1} parent=87 // pred_region
          %676 = dma.done [#allocation6], 16
        $region100: #{tpu_custom_call.1} parent=87 // pred_fallthru
          _
        // Predicated region
        $region101: #{tpu_custom_call.1} parent=87 // pred_check
          %p677 = pneg %p126
        $region102: #{tpu_custom_call.1} parent=87 // pred_check_branch
          %679 = sbr.rel (%p677) target = $region104
        $region103: #{tpu_custom_call.1} parent=87 // pred_region
          %680 = dma.done [#allocation9], 2048
        $region104: #{tpu_custom_call.1} parent=87 // pred_fallthru
          _
        // Predicated region
        $region105: #{tpu_custom_call.1} parent=87 // pred_check
          %p681 = pneg %p147
        $region106: #{tpu_custom_call.1} parent=87 // pred_check_branch
          %683 = sbr.rel (%p681) target = $region108
        $region107: #{tpu_custom_call.1} parent=87 // pred_region
          %684 = dma.done [#allocation9], 16
        $region108: #{tpu_custom_call.1} parent=87 // pred_fallthru
          _
        // Predicated region
        $region109: #{tpu_custom_call.1} parent=87 // pred_check
          %p685 = pneg %p168
        $region110: #{tpu_custom_call.1} parent=87 // pred_check_branch
          %687 = sbr.rel (%p685) target = $region112
        $region111: #{tpu_custom_call.1} parent=87 // pred_region
          %688 = dma.done [#allocation12], 2048
        $region112: #{tpu_custom_call.1} parent=87 // pred_fallthru
          _
        // Predicated region
        $region113: #{tpu_custom_call.1} parent=87 // pred_check
          %p689 = pneg %p189
        $region114: #{tpu_custom_call.1} parent=87 // pred_check_branch
          %691 = sbr.rel (%p689) target = $region116
        $region115: #{tpu_custom_call.1} parent=87 // pred_region
          %692 = dma.done [#allocation12], 16
        $region116: #{tpu_custom_call.1} parent=87 // pred_fallthru
          _
        // Predicated region
        $region117: #{tpu_custom_call.1} parent=87 // pred_check
          %p693 = pneg %p210
        $region118: #{tpu_custom_call.1} parent=87 // pred_check_branch
          %695 = sbr.rel (%p693) target = $region120
        $region119: #{tpu_custom_call.1} parent=87 // pred_region
          %696 = dma.done [#allocation15], 2048
        $region120: #{tpu_custom_call.1} parent=87 // pred_fallthru
          _
        // Predicated region
        $region121: #{tpu_custom_call.1} parent=87 // pred_check
          %p697 = pneg %p231
        $region122: #{tpu_custom_call.1} parent=87 // pred_check_branch
          %699 = sbr.rel (%p697) target = $region124
        $region123: #{tpu_custom_call.1} parent=87 // pred_region
          %700 = dma.done [#allocation15], 16
        $region124: #{tpu_custom_call.1} parent=87 // pred_fallthru
          _
        // Predicated region
        $region125: #{tpu_custom_call.1} parent=87 // pred_check
          %p701 = pneg %p252
        $region126: #{tpu_custom_call.1} parent=87 // pred_check_branch
          %703 = sbr.rel (%p701) target = $region128
        $region127: #{tpu_custom_call.1} parent=87 // pred_region
          %704 = dma.done [#allocation18], 16
        $region128: #{tpu_custom_call.1} parent=87 // pred_fallthru
          _
        // Predicated region
        $region129: #{tpu_custom_call.1} parent=87 // pred_check
          %p705 = pneg %p273
        $region130: #{tpu_custom_call.1} parent=87 // pred_check_branch
          %707 = sbr.rel (%p705) target = $region132
        $region131: #{tpu_custom_call.1} parent=87 // pred_region
          %708 = dma.done [#allocation18], 16
        $region132: #{tpu_custom_call.1} parent=87 // pred_fallthru
          _
        // Predicated region
        $region133: #{tpu_custom_call.1} parent=87 // pred_check
          %p709 = pneg %p294
        $region134: #{tpu_custom_call.1} parent=87 // pred_check_branch
          %711 = sbr.rel (%p709) target = $region136
        $region135: #{tpu_custom_call.1} parent=87 // pred_region
          %712 = dma.done [#allocation21], 4096
        $region136: #{tpu_custom_call.1} parent=87 // pred_fallthru
          _
        // Predicated region
        $region137: #{tpu_custom_call.1} parent=87 // pred_check
          %p713 = pneg %p315
        $region138: #{tpu_custom_call.1} parent=87 // pred_check_branch
          %715 = sbr.rel (%p713) target = $region140
        $region139: #{tpu_custom_call.1} parent=87 // pred_region
          %716 = dma.done [#allocation21], 32
        $region140: #{tpu_custom_call.1} parent=87 // pred_fallthru
          _
        // Predicated region
        $region141: #{tpu_custom_call.1} parent=87 // pred_check
          %p717 = pneg %p336
        $region142: #{tpu_custom_call.1} parent=87 // pred_check_branch
          %719 = sbr.rel (%p717) target = $region144
        $region143: #{tpu_custom_call.1} parent=87 // pred_region
          %720 = dma.done [#allocation24], 4096
        $region144: #{tpu_custom_call.1} parent=87 // pred_fallthru
          _
        // Predicated region
        $region145: #{tpu_custom_call.1} parent=87 // pred_check
          %p721 = pneg %p357
        $region146: #{tpu_custom_call.1} parent=87 // pred_check_branch
          %723 = sbr.rel (%p721) target = $region148
        $region147: #{tpu_custom_call.1} parent=87 // pred_region
          %724 = dma.done [#allocation24], 16
        $region148: #{tpu_custom_call.1} parent=87 // pred_fallthru
          _
        // Predicated region
        $region149: #{tpu_custom_call.1} parent=87 // pred_check
          %p725 = pneg %p378
        $region150: #{tpu_custom_call.1} parent=87 // pred_check_branch
          %727 = sbr.rel (%p725) target = $region152
        $region151: #{tpu_custom_call.1} parent=87 // pred_region
          %728 = dma.done [#allocation27], 16
        $region152: #{tpu_custom_call.1} parent=87 // pred_fallthru
          _
        // Predicated region
        $region153: #{tpu_custom_call.1} parent=87 // pred_check
          %p729 = pneg %p399
        $region154: #{tpu_custom_call.1} parent=87 // pred_check_branch
          %731 = sbr.rel (%p729) target = $region156
        $region155: #{tpu_custom_call.1} parent=87 // pred_region
          %732 = dma.done [#allocation27], 16
        $region156: #{tpu_custom_call.1} parent=87 // pred_fallthru
          _
        %s733 = sand.u32 %s50, 1
        %s734 = scalar_lea.sflag [#allocation3], %s733
        %s735 = sand.u32 %s50, 1
        %s736 = smul.addr %s735, 16
        %s737 = scalar_lea.vmem [#allocation2], %s736
        %p738 = pneg %p63
        %p739 = pneg %p60
        %p740 = pneg %p84
        %p741 = pneg %p81
        %p742 = pneg %p105
        %p743 = pneg %p102
        %p744 = pneg %p126
        %p745 = pneg %p123
        %p746 = pneg %p147
        %p747 = pneg %p144
        %p748 = pneg %p168
        %p749 = pneg %p165
        %p750 = pneg %p189
        %p751 = pneg %p186
        %p752 = pneg %p210
        %p753 = pneg %p207
        %p754 = pneg %p231
        %p755 = pneg %p228
        %p756 = pneg %p252
        %p757 = pneg %p249
        %p758 = pneg %p273
        %p759 = pneg %p270
        %p760 = pneg %p294
        %p761 = pneg %p291
        %p762 = pneg %p315
        %p763 = pneg %p312
        %p764 = pneg %p336
        %p765 = pneg %p333
        %p766 = pneg %p357
        %p767 = pneg %p354
        %p768 = pneg %p378
        %p769 = pneg %p375
        %p770 = pneg %p399
        %p771 = pneg %p396
        %p772 = pneg %p425
        %p773 = pneg %p422
        %s774 = sand.u32 %s412, 1
        %s775 = scalar_lea.sflag [#allocation4], %s774
        %s776 = sand.u32 %s412, 1
        %s777 = smul.addr %s776, 16
        %s778 = scalar_lea.vmem [#allocation29], %s777
        %v779 = vld [vmem:[%s664] sm:$0xff]
        %v780 = vld [vmem:[%s664 + $0x8] sm:$0xff]
        %v781 = vld [vmem:[#allocation5] sm:$0xff]
        %v782 = vld [vmem:[#allocation5 + $0x8] sm:$0xff]
        %v783 = vld [vmem:[#allocation5 + $0x10] sm:$0xff]
        %v784 = vld [vmem:[#allocation5 + $0x18] sm:$0xff]
        %v785 = vld [vmem:[#allocation5 + $0x20] sm:$0xff]
        %v786 = vld [vmem:[#allocation5 + $0x28] sm:$0xff]
        %v787 = vld [vmem:[#allocation5 + $0x30] sm:$0xff]
        %v788 = vld [vmem:[#allocation5 + $0x38] sm:$0xff]
        %v789 = vld [vmem:[#allocation5 + $0x40] sm:$0xff]
        %v790 = vld [vmem:[#allocation5 + $0x48] sm:$0xff]
        %v791 = vld [vmem:[#allocation5 + $0x50] sm:$0xff]
        %v792 = vld [vmem:[#allocation5 + $0x58] sm:$0xff]
        %v793 = vld [vmem:[#allocation5 + $0x60] sm:$0xff]
        %v794 = vld [vmem:[#allocation5 + $0x68] sm:$0xff]
        %v795 = vld [vmem:[#allocation5 + $0x70] sm:$0xff]
        %v796 = vld [vmem:[#allocation5 + $0x78] sm:$0xff]
        %v797 = vld [vmem:[#allocation7] sm:$0x1]
        %v799 = vlaneseq
        %v800 = vshrl.u32 %v799, 7
        %v801 = vsub.s32 0, %v800
        %v802 = vrot.slane %v797, %v801
        %804 = vmatprep.subr.mxu0 0.0
        %805 = vmatpush1.msra.mxu0 %v781
        %806 = vmatprep.subr.mxu0 0.0
        %807 = vmatpush1.msra.mxu0 %v782
        %808 = vmatprep.subr.mxu0 0.0
        %809 = vmatpush1.msra.mxu0 %v783
        %810 = vmatprep.subr.mxu0 0.0
        %811 = vmatpush1.msra.mxu0 %v784
        %812 = vmatprep.subr.mxu0 0.0
        %813 = vmatpush1.msra.mxu0 %v785
        %814 = vmatprep.subr.mxu0 0.0
        %815 = vmatpush1.msra.mxu0 %v786
        %816 = vmatprep.subr.mxu0 0.0
        %817 = vmatpush1.msra.mxu0 %v787
        %818 = vmatprep.subr.mxu0 0.0
        %819 = vmatpush1.msra.mxu0 %v788
        %820 = vmatprep.subr.mxu0 0.0
        %821 = vmatpush1.msra.mxu0 %v789
        %822 = vmatprep.subr.mxu0 0.0
        %823 = vmatpush1.msra.mxu0 %v790
        %824 = vmatprep.subr.mxu0 0.0
        %825 = vmatpush1.msra.mxu0 %v791
        %826 = vmatprep.subr.mxu0 0.0
        %827 = vmatpush1.msra.mxu0 %v792
        %828 = vmatprep.subr.mxu0 0.0
        %829 = vmatpush1.msra.mxu0 %v793
        %830 = vmatprep.subr.mxu0 0.0
        %831 = vmatpush1.msra.mxu0 %v794
        %832 = vmatprep.subr.mxu0 0.0
        %833 = vmatpush1.msra.mxu0 %v795
        %834 = vmatprep.subr.mxu0 0.0
        %835 = vmatpush1.msra.mxu0 %v796
        %836 = vmatprep.subr.mxu0 0.0
        %837 = vmatpush1.msra.mxu0 0.0
        %838 = vmatprep.subr.mxu0 0.0
        %839 = vmatpush1.msra.mxu0 0.0
        %840 = vmatprep.subr.mxu0 0.0
        %841 = vmatpush1.msra.mxu0 0.0
        %842 = vmatprep.subr.mxu0 0.0
        %843 = vmatpush1.msra.mxu0 0.0
        %844 = vmatprep.subr.mxu0 0.0
        %845 = vmatpush1.msra.mxu0 0.0
        %846 = vmatprep.subr.mxu0 0.0
        %847 = vmatpush1.msra.mxu0 0.0
        %848 = vmatprep.subr.mxu0 0.0
        %849 = vmatpush1.msra.mxu0 0.0
        %850 = vmatprep.subr.mxu0 0.0
        %851 = vmatpush1.msra.mxu0 0.0
        %852 = vmatprep.subr.mxu0 0.0
        %853 = vmatpush1.msra.mxu0 0.0
        %854 = vmatprep.subr.mxu0 0.0
        %855 = vmatpush1.msra.mxu0 0.0
        %856 = vmatprep.subr.mxu0 0.0
        %857 = vmatpush1.msra.mxu0 0.0
        %858 = vmatprep.subr.mxu0 0.0
        %859 = vmatpush1.msra.mxu0 0.0
        %860 = vmatprep.subr.mxu0 0.0
        %861 = vmatpush1.msra.mxu0 0.0
        %862 = vmatprep.subr.mxu0 0.0
        %863 = vmatpush1.msra.mxu0 0.0
        %864 = vmatprep.subr.mxu0 0.0
        %865 = vmatpush1.msra.mxu0 0.0
        %866 = vmatprep.subr.mxu0 0.0
        %867 = vmatpush1.msra.mxu0 0.0
        %868 = vmatprep.mubr.f32.mxu0 0.0
        %869 = vmatmul.mubr.f32.gmra.mrb[0].mxu0 %v779
        %v870 = vpop.f32.mrb[0].mxu0
        %v871 = vadd.f32 %v802, %v870
        %v872 = vpop.f32.mrb[0].mxu0
        %873 = vmatprep.mubr.f32.mxu0 0.0
        %874 = vmatmul.mubr.f32.gmra.mrb[0].mxu0 %v780
        %v875 = vpop.f32.mrb[0].mxu0
        %v876 = vadd.f32 %v802, %v875
        %v877 = vpop.f32.mrb[0].mxu0
        %878 = vdwg.mxu0
        %v879 = vld [vmem:[#allocation8] sm:$0xff]
        %v880 = vld [vmem:[#allocation8 + $0x8] sm:$0xff]
        %v881 = vld [vmem:[#allocation8 + $0x10] sm:$0xff]
        %v882 = vld [vmem:[#allocation8 + $0x18] sm:$0xff]
        %v883 = vld [vmem:[#allocation8 + $0x20] sm:$0xff]
        %v884 = vld [vmem:[#allocation8 + $0x28] sm:$0xff]
        %v885 = vld [vmem:[#allocation8 + $0x30] sm:$0xff]
        %v886 = vld [vmem:[#allocation8 + $0x38] sm:$0xff]
        %v887 = vld [vmem:[#allocation8 + $0x40] sm:$0xff]
        %v888 = vld [vmem:[#allocation8 + $0x48] sm:$0xff]
        %v889 = vld [vmem:[#allocation8 + $0x50] sm:$0xff]
        %v890 = vld [vmem:[#allocation8 + $0x58] sm:$0xff]
        %v891 = vld [vmem:[#allocation8 + $0x60] sm:$0xff]
        %v892 = vld [vmem:[#allocation8 + $0x68] sm:$0xff]
        %v893 = vld [vmem:[#allocation8 + $0x70] sm:$0xff]
        %v894 = vld [vmem:[#allocation8 + $0x78] sm:$0xff]
        %v895 = vld [vmem:[#allocation10] sm:$0x1]
        %v897 = vlaneseq
        %v898 = vshrl.u32 %v897, 7
        %v899 = vsub.s32 0, %v898
        %v900 = vrot.slane %v895, %v899
        %902 = vmatprep.subr.mxu0 0.0
        %903 = vmatpush1.msra.mxu0 %v879
        %904 = vmatprep.subr.mxu0 0.0
        %905 = vmatpush1.msra.mxu0 %v880
        %906 = vmatprep.subr.mxu0 0.0
        %907 = vmatpush1.msra.mxu0 %v881
        %908 = vmatprep.subr.mxu0 0.0
        %909 = vmatpush1.msra.mxu0 %v882
        %910 = vmatprep.subr.mxu0 0.0
        %911 = vmatpush1.msra.mxu0 %v883
        %912 = vmatprep.subr.mxu0 0.0
        %913 = vmatpush1.msra.mxu0 %v884
        %914 = vmatprep.subr.mxu0 0.0
        %915 = vmatpush1.msra.mxu0 %v885
        %916 = vmatprep.subr.mxu0 0.0
        %917 = vmatpush1.msra.mxu0 %v886
        %918 = vmatprep.subr.mxu0 0.0
        %919 = vmatpush1.msra.mxu0 %v887
        %920 = vmatprep.subr.mxu0 0.0
        %921 = vmatpush1.msra.mxu0 %v888
        %922 = vmatprep.subr.mxu0 0.0
        %923 = vmatpush1.msra.mxu0 %v889
        %924 = vmatprep.subr.mxu0 0.0
        %925 = vmatpush1.msra.mxu0 %v890
        %926 = vmatprep.subr.mxu0 0.0
        %927 = vmatpush1.msra.mxu0 %v891
        %928 = vmatprep.subr.mxu0 0.0
        %929 = vmatpush1.msra.mxu0 %v892
        %930 = vmatprep.subr.mxu0 0.0
        %931 = vmatpush1.msra.mxu0 %v893
        %932 = vmatprep.subr.mxu0 0.0
        %933 = vmatpush1.msra.mxu0 %v894
        %934 = vmatprep.subr.mxu0 0.0
        %935 = vmatpush1.msra.mxu0 0.0
        %936 = vmatprep.subr.mxu0 0.0
        %937 = vmatpush1.msra.mxu0 0.0
        %938 = vmatprep.subr.mxu0 0.0
        %939 = vmatpush1.msra.mxu0 0.0
        %940 = vmatprep.subr.mxu0 0.0
        %941 = vmatpush1.msra.mxu0 0.0
        %942 = vmatprep.subr.mxu0 0.0
        %943 = vmatpush1.msra.mxu0 0.0
        %944 = vmatprep.subr.mxu0 0.0
        %945 = vmatpush1.msra.mxu0 0.0
        %946 = vmatprep.subr.mxu0 0.0
        %947 = vmatpush1.msra.mxu0 0.0
        %948 = vmatprep.subr.mxu0 0.0
        %949 = vmatpush1.msra.mxu0 0.0
        %950 = vmatprep.subr.mxu0 0.0
        %951 = vmatpush1.msra.mxu0 0.0
        %952 = vmatprep.subr.mxu0 0.0
        %953 = vmatpush1.msra.mxu0 0.0
        %954 = vmatprep.subr.mxu0 0.0
        %955 = vmatpush1.msra.mxu0 0.0
        %956 = vmatprep.subr.mxu0 0.0
        %957 = vmatpush1.msra.mxu0 0.0
        %958 = vmatprep.subr.mxu0 0.0
        %959 = vmatpush1.msra.mxu0 0.0
        %960 = vmatprep.subr.mxu0 0.0
        %961 = vmatpush1.msra.mxu0 0.0
        %962 = vmatprep.subr.mxu0 0.0
        %963 = vmatpush1.msra.mxu0 0.0
        %964 = vmatprep.subr.mxu0 0.0
        %965 = vmatpush1.msra.mxu0 0.0
        %966 = vmatprep.mubr.f32.mxu0 0.0
        %967 = vmatmul.mubr.f32.gmra.mrb[0].mxu0 %v779
        %v968 = vpop.f32.mrb[0].mxu0
        %v969 = vadd.f32 %v900, %v968
        %v970 = vpop.f32.mrb[0].mxu0
        %971 = vmatprep.mubr.f32.mxu0 0.0
        %972 = vmatmul.mubr.f32.gmra.mrb[0].mxu0 %v780
        %v973 = vpop.f32.mrb[0].mxu0
        %v974 = vadd.f32 %v900, %v973
        %v975 = vpop.f32.mrb[0].mxu0
        %976 = vdwg.mxu0
        %v977 = vld [vmem:[#allocation11] sm:$0xff]
        %v978 = vld [vmem:[#allocation11 + $0x8] sm:$0xff]
        %v979 = vld [vmem:[#allocation11 + $0x10] sm:$0xff]
        %v980 = vld [vmem:[#allocation11 + $0x18] sm:$0xff]
        %v981 = vld [vmem:[#allocation11 + $0x20] sm:$0xff]
        %v982 = vld [vmem:[#allocation11 + $0x28] sm:$0xff]
        %v983 = vld [vmem:[#allocation11 + $0x30] sm:$0xff]
        %v984 = vld [vmem:[#allocation11 + $0x38] sm:$0xff]
        %v985 = vld [vmem:[#allocation11 + $0x40] sm:$0xff]
        %v986 = vld [vmem:[#allocation11 + $0x48] sm:$0xff]
        %v987 = vld [vmem:[#allocation11 + $0x50] sm:$0xff]
        %v988 = vld [vmem:[#allocation11 + $0x58] sm:$0xff]
        %v989 = vld [vmem:[#allocation11 + $0x60] sm:$0xff]
        %v990 = vld [vmem:[#allocation11 + $0x68] sm:$0xff]
        %v991 = vld [vmem:[#allocation11 + $0x70] sm:$0xff]
        %v992 = vld [vmem:[#allocation11 + $0x78] sm:$0xff]
        %v993 = vld [vmem:[#allocation13] sm:$0x1]
        %v995 = vlaneseq
        %v996 = vshrl.u32 %v995, 7
        %v997 = vsub.s32 0, %v996
        %v998 = vrot.slane %v993, %v997
        %1000 = vmatprep.subr.mxu0 0.0
        %1001 = vmatpush1.msra.mxu0 %v977
        %1002 = vmatprep.subr.mxu0 0.0
        %1003 = vmatpush1.msra.mxu0 %v978
        %1004 = vmatprep.subr.mxu0 0.0
        %1005 = vmatpush1.msra.mxu0 %v979
        %1006 = vmatprep.subr.mxu0 0.0
        %1007 = vmatpush1.msra.mxu0 %v980
        %1008 = vmatprep.subr.mxu0 0.0
        %1009 = vmatpush1.msra.mxu0 %v981
        %1010 = vmatprep.subr.mxu0 0.0
        %1011 = vmatpush1.msra.mxu0 %v982
        %1012 = vmatprep.subr.mxu0 0.0
        %1013 = vmatpush1.msra.mxu0 %v983
        %1014 = vmatprep.subr.mxu0 0.0
        %1015 = vmatpush1.msra.mxu0 %v984
        %1016 = vmatprep.subr.mxu0 0.0
        %1017 = vmatpush1.msra.mxu0 %v985
        %1018 = vmatprep.subr.mxu0 0.0
        %1019 = vmatpush1.msra.mxu0 %v986
        %1020 = vmatprep.subr.mxu0 0.0
        %1021 = vmatpush1.msra.mxu0 %v987
        %1022 = vmatprep.subr.mxu0 0.0
        %1023 = vmatpush1.msra.mxu0 %v988
        %1024 = vmatprep.subr.mxu0 0.0
        %1025 = vmatpush1.msra.mxu0 %v989
        %1026 = vmatprep.subr.mxu0 0.0
        %1027 = vmatpush1.msra.mxu0 %v990
        %1028 = vmatprep.subr.mxu0 0.0
        %1029 = vmatpush1.msra.mxu0 %v991
        %1030 = vmatprep.subr.mxu0 0.0
        %1031 = vmatpush1.msra.mxu0 %v992
        %1032 = vmatprep.subr.mxu0 0.0
        %1033 = vmatpush1.msra.mxu0 0.0
        %1034 = vmatprep.subr.mxu0 0.0
        %1035 = vmatpush1.msra.mxu0 0.0
        %1036 = vmatprep.subr.mxu0 0.0
        %1037 = vmatpush1.msra.mxu0 0.0
        %1038 = vmatprep.subr.mxu0 0.0
        %1039 = vmatpush1.msra.mxu0 0.0
        %1040 = vmatprep.subr.mxu0 0.0
        %1041 = vmatpush1.msra.mxu0 0.0
        %1042 = vmatprep.subr.mxu0 0.0
        %1043 = vmatpush1.msra.mxu0 0.0
        %1044 = vmatprep.subr.mxu0 0.0
        %1045 = vmatpush1.msra.mxu0 0.0
        %1046 = vmatprep.subr.mxu0 0.0
        %1047 = vmatpush1.msra.mxu0 0.0
        %1048 = vmatprep.subr.mxu0 0.0
        %1049 = vmatpush1.msra.mxu0 0.0
        %1050 = vmatprep.subr.mxu0 0.0
        %1051 = vmatpush1.msra.mxu0 0.0
        %1052 = vmatprep.subr.mxu0 0.0
        %1053 = vmatpush1.msra.mxu0 0.0
        %1054 = vmatprep.subr.mxu0 0.0
        %1055 = vmatpush1.msra.mxu0 0.0
        %1056 = vmatprep.subr.mxu0 0.0
        %1057 = vmatpush1.msra.mxu0 0.0
        %1058 = vmatprep.subr.mxu0 0.0
        %1059 = vmatpush1.msra.mxu0 0.0
        %1060 = vmatprep.subr.mxu0 0.0
        %1061 = vmatpush1.msra.mxu0 0.0
        %1062 = vmatprep.subr.mxu0 0.0
        %1063 = vmatpush1.msra.mxu0 0.0
        %1064 = vmatprep.mubr.f32.mxu0 0.0
        %1065 = vmatmul.mubr.f32.gmra.mrb[0].mxu0 %v779
        %v1066 = vpop.f32.mrb[0].mxu0
        %v1067 = vadd.f32 %v998, %v1066
        %v1068 = vpop.f32.mrb[0].mxu0
        %1069 = vmatprep.mubr.f32.mxu0 0.0
        %1070 = vmatmul.mubr.f32.gmra.mrb[0].mxu0 %v780
        %v1071 = vpop.f32.mrb[0].mxu0
        %v1072 = vadd.f32 %v998, %v1071
        %v1073 = vpop.f32.mrb[0].mxu0
        %1074 = vdwg.mxu0
        %vm1075 = vcmask 261120
        %v1077 = vsel %vm1075, %v871, 0
        %v1080 = vsel %vm1075, %v876, 0
        %v1083 = vsel %vm1075, %v969, 0
        %v1086 = vsel %vm1075, %v974, 0
        %1088 = vmatprep.subr.mxu0 0.0
        %1089 = vmatpush1.xpose.msra.mxu0 %v1083
        %1090 = vmatprep.subr.mxu0 0.0
        %1091 = vmatpush1.xpose.msra.mxu0 %v1086
        %1092 = vmatprep.subr.mxu0 0.0
        %1093 = vmatpush1.xpose.msra.mxu0 0.0
        %1094 = vmatprep.subr.mxu0 0.0
        %1095 = vmatpush1.xpose.msra.mxu0 0.0
        %1096 = vmatprep.subr.mxu0 0.0
        %1097 = vmatpush1.xpose.msra.mxu0 0.0
        %1098 = vmatprep.subr.mxu0 0.0
        %1099 = vmatpush1.xpose.msra.mxu0 0.0
        %1100 = vmatprep.subr.mxu0 0.0
        %1101 = vmatpush1.xpose.msra.mxu0 0.0
        %1102 = vmatprep.subr.mxu0 0.0
        %1103 = vmatpush1.xpose.msra.mxu0 0.0
        %1104 = vmatprep.subr.mxu0 0.0
        %1105 = vmatpush1.xpose.msra.mxu0 0.0
        %1106 = vmatprep.subr.mxu0 0.0
        %1107 = vmatpush1.xpose.msra.mxu0 0.0
        %1108 = vmatprep.subr.mxu0 0.0
        %1109 = vmatpush1.xpose.msra.mxu0 0.0
        %1110 = vmatprep.subr.mxu0 0.0
        %1111 = vmatpush1.xpose.msra.mxu0 0.0
        %1112 = vmatprep.subr.mxu0 0.0
        %1113 = vmatpush1.xpose.msra.mxu0 0.0
        %1114 = vmatprep.subr.mxu0 0.0
        %1115 = vmatpush1.xpose.msra.mxu0 0.0
        %1116 = vmatprep.subr.mxu0 0.0
        %1117 = vmatpush1.xpose.msra.mxu0 0.0
        %1118 = vmatprep.subr.mxu0 0.0
        %1119 = vmatpush1.xpose.msra.mxu0 0.0
        %1120 = vmatprep.subr.mxu0 0.0
        %1121 = vmatpush1.xpose.msra.mxu0 0.0
        %1122 = vmatprep.subr.mxu0 0.0
        %1123 = vmatpush1.xpose.msra.mxu0 0.0
        %1124 = vmatprep.subr.mxu0 0.0
        %1125 = vmatpush1.xpose.msra.mxu0 0.0
        %1126 = vmatprep.subr.mxu0 0.0
        %1127 = vmatpush1.xpose.msra.mxu0 0.0
        %1128 = vmatprep.subr.mxu0 0.0
        %1129 = vmatpush1.xpose.msra.mxu0 0.0
        %1130 = vmatprep.subr.mxu0 0.0
        %1131 = vmatpush1.xpose.msra.mxu0 0.0
        %1132 = vmatprep.subr.mxu0 0.0
        %1133 = vmatpush1.xpose.msra.mxu0 0.0
        %1134 = vmatprep.subr.mxu0 0.0
        %1135 = vmatpush1.xpose.msra.mxu0 0.0
        %1136 = vmatprep.subr.mxu0 0.0
        %1137 = vmatpush1.xpose.msra.mxu0 0.0
        %1138 = vmatprep.subr.mxu0 0.0
        %1139 = vmatpush1.xpose.msra.mxu0 0.0
        %1140 = vmatprep.subr.mxu0 0.0
        %1141 = vmatpush1.xpose.msra.mxu0 0.0
        %1142 = vmatprep.subr.mxu0 0.0
        %1143 = vmatpush1.xpose.msra.mxu0 0.0
        %1144 = vmatprep.subr.mxu0 0.0
        %1145 = vmatpush1.xpose.msra.mxu0 0.0
        %1146 = vmatprep.subr.mxu0 0.0
        %1147 = vmatpush1.xpose.msra.mxu0 0.0
        %1148 = vmatprep.subr.mxu0 0.0
        %1149 = vmatpush1.xpose.msra.mxu0 0.0
        %1150 = vmatprep.subr.mxu0 0.0
        %1151 = vmatpush1.xpose.msra.mxu0 0.0
        %1152 = vmatprep.mubr.f32.mxu0 0.0
        %1153 = vmatmul.mubr.f32.gmra.mrb[0].mxu0 %v1077
        %v1154 = vpop.f32.mrb[0].mxu0
        %v1155 = vadd.f32 0.0, %v1154
        %v1156 = vpop.f32.mrb[0].mxu0
        %1157 = vmatprep.mubr.f32.mxu0 0.0
        %1158 = vmatmul.mubr.f32.gmra.mrb[0].mxu0 %v1080
        %v1159 = vpop.f32.mrb[0].mxu0
        %v1160 = vadd.f32 0.0, %v1159
        %v1161 = vpop.f32.mrb[0].mxu0
        %1162 = vdwg.mxu0
        %v1163 = vmul.f32 %v1155, 0.17677669
        %v1164 = vmul.f32 %v1160, 0.17677669
        %vm1165 = vcmask 130048
        %v1166 = vsel %vm1165, %v1163, -inf
        %1167 = vmax.xlane.f32.xlu0 %v1166
        %v1168 = vpop.xlane.xlu0 %1167
        %v1169 = vsel %vm1165, %v1164, -inf
        %1170 = vmax.xlane.f32.xlu0 %v1169
        %v1171 = vpop.xlane.xlu0 %1170
        %v1172 = vsub.f32 %v1163, %v1168
        %v1173 = vsub.f32 %v1164, %v1171
        %v1174 = vmul.f32 %v1172, 1.442695
        %v1175 = vpow.pop %v1174
        %v1176 = vmul.f32 %v1173, 1.442695
        %v1177 = vpow.pop %v1176
        %v1178 = vsel %vm1165, %v1175, 0.0
        %1179 = vadd.xlane.f32.xlu0 %v1178
        %v1180 = vpop.xlane.xlu0 %1179
        %v1181 = vsel %vm1165, %v1177, 0.0
        %1182 = vadd.xlane.f32.xlu0 %v1181
        %v1183 = vpop.xlane.xlu0 %1182
        %v1184 = vrcp.pop %v1180
        %v1185 = vmul.f32 %v1175, %v1184
        %v1186 = vrcp.pop %v1183
        %v1187 = vmul.f32 %v1177, %v1186
        %v1189 = vsel %vm1165, %v1185, 0
        %v1192 = vsel %vm1165, %v1187, 0
        %1194 = vmatprep.subr.mxu0 0.0
        %1195 = vmatpush1.msra.mxu0 %v1067
        %1196 = vmatprep.subr.mxu0 0.0
        %1197 = vmatpush1.msra.mxu0 %v1072
        %1198 = vmatprep.subr.mxu0 0.0
        %1199 = vmatpush1.msra.mxu0 0.0
        %1200 = vmatprep.subr.mxu0 0.0
        %1201 = vmatpush1.msra.mxu0 0.0
        %1202 = vmatprep.subr.mxu0 0.0
        %1203 = vmatpush1.msra.mxu0 0.0
        %1204 = vmatprep.subr.mxu0 0.0
        %1205 = vmatpush1.msra.mxu0 0.0
        %1206 = vmatprep.subr.mxu0 0.0
        %1207 = vmatpush1.msra.mxu0 0.0
        %1208 = vmatprep.subr.mxu0 0.0
        %1209 = vmatpush1.msra.mxu0 0.0
        %1210 = vmatprep.subr.mxu0 0.0
        %1211 = vmatpush1.msra.mxu0 0.0
        %1212 = vmatprep.subr.mxu0 0.0
        %1213 = vmatpush1.msra.mxu0 0.0
        %1214 = vmatprep.subr.mxu0 0.0
        %1215 = vmatpush1.msra.mxu0 0.0
        %1216 = vmatprep.subr.mxu0 0.0
        %1217 = vmatpush1.msra.mxu0 0.0
        %1218 = vmatprep.subr.mxu0 0.0
        %1219 = vmatpush1.msra.mxu0 0.0
        %1220 = vmatprep.subr.mxu0 0.0
        %1221 = vmatpush1.msra.mxu0 0.0
        %1222 = vmatprep.subr.mxu0 0.0
        %1223 = vmatpush1.msra.mxu0 0.0
        %1224 = vmatprep.subr.mxu0 0.0
        %1225 = vmatpush1.msra.mxu0 0.0
        %1226 = vmatprep.subr.mxu0 0.0
        %1227 = vmatpush1.msra.mxu0 0.0
        %1228 = vmatprep.subr.mxu0 0.0
        %1229 = vmatpush1.msra.mxu0 0.0
        %1230 = vmatprep.subr.mxu0 0.0
        %1231 = vmatpush1.msra.mxu0 0.0
        %1232 = vmatprep.subr.mxu0 0.0
        %1233 = vmatpush1.msra.mxu0 0.0
        %1234 = vmatprep.subr.mxu0 0.0
        %1235 = vmatpush1.msra.mxu0 0.0
        %1236 = vmatprep.subr.mxu0 0.0
        %1237 = vmatpush1.msra.mxu0 0.0
        %1238 = vmatprep.subr.mxu0 0.0
        %1239 = vmatpush1.msra.mxu0 0.0
        %1240 = vmatprep.subr.mxu0 0.0
        %1241 = vmatpush1.msra.mxu0 0.0
        %1242 = vmatprep.subr.mxu0 0.0
        %1243 = vmatpush1.msra.mxu0 0.0
        %1244 = vmatprep.subr.mxu0 0.0
        %1245 = vmatpush1.msra.mxu0 0.0
        %1246 = vmatprep.subr.mxu0 0.0
        %1247 = vmatpush1.msra.mxu0 0.0
        %1248 = vmatprep.subr.mxu0 0.0
        %1249 = vmatpush1.msra.mxu0 0.0
        %1250 = vmatprep.subr.mxu0 0.0
        %1251 = vmatpush1.msra.mxu0 0.0
        %1252 = vmatprep.subr.mxu0 0.0
        %1253 = vmatpush1.msra.mxu0 0.0
        %1254 = vmatprep.subr.mxu0 0.0
        %1255 = vmatpush1.msra.mxu0 0.0
        %1256 = vmatprep.subr.mxu0 0.0
        %1257 = vmatpush1.msra.mxu0 0.0
        %1258 = vmatprep.mubr.f32.mxu0 0.0
        %1259 = vmatmul.mubr.f32.gmra.mrb[0].mxu0 %v1189
        %v1260 = vpop.f32.mrb[0].mxu0
        %v1261 = vadd.f32 0.0, %v1260
        %v1262 = vpop.f32.mrb[0].mxu0
        %1263 = vmatprep.mubr.f32.mxu0 0.0
        %1264 = vmatmul.mubr.f32.gmra.mrb[0].mxu0 %v1192
        %v1265 = vpop.f32.mrb[0].mxu0
        %v1266 = vadd.f32 0.0, %v1265
        %v1267 = vpop.f32.mrb[0].mxu0
        %1268 = vdwg.mxu0
        %1269 = vrot.lane.b32.xlu0 %v871, 96
        %v1270 = vpop.permute.xlu0 %1269
        %1271 = vrot.lane.b32.xlu0 %v876, 96
        %v1272 = vpop.permute.xlu0 %1271
        %1273 = vrot.lane.b32.xlu0 %v969, 96
        %v1274 = vpop.permute.xlu0 %1273
        %1275 = vrot.lane.b32.xlu0 %v974, 96
        %v1276 = vpop.permute.xlu0 %1275
        %v1277 = vsel %vm1075, %v1270, 0
        %v1279 = vsel %vm1075, %v1272, 0
        %v1281 = vsel %vm1075, %v1274, 0
        %v1283 = vsel %vm1075, %v1276, 0
        %1285 = vmatprep.subr.mxu0 0.0
        %1286 = vmatpush1.xpose.msra.mxu0 %v1281
        %1287 = vmatprep.subr.mxu0 0.0
        %1288 = vmatpush1.xpose.msra.mxu0 %v1283
        %1289 = vmatprep.subr.mxu0 0.0
        %1290 = vmatpush1.xpose.msra.mxu0 0.0
        %1291 = vmatprep.subr.mxu0 0.0
        %1292 = vmatpush1.xpose.msra.mxu0 0.0
        %1293 = vmatprep.subr.mxu0 0.0
        %1294 = vmatpush1.xpose.msra.mxu0 0.0
        %1295 = vmatprep.subr.mxu0 0.0
        %1296 = vmatpush1.xpose.msra.mxu0 0.0
        %1297 = vmatprep.subr.mxu0 0.0
        %1298 = vmatpush1.xpose.msra.mxu0 0.0
        %1299 = vmatprep.subr.mxu0 0.0
        %1300 = vmatpush1.xpose.msra.mxu0 0.0
        %1301 = vmatprep.subr.mxu0 0.0
        %1302 = vmatpush1.xpose.msra.mxu0 0.0
        %1303 = vmatprep.subr.mxu0 0.0
        %1304 = vmatpush1.xpose.msra.mxu0 0.0
        %1305 = vmatprep.subr.mxu0 0.0
        %1306 = vmatpush1.xpose.msra.mxu0 0.0
        %1307 = vmatprep.subr.mxu0 0.0
        %1308 = vmatpush1.xpose.msra.mxu0 0.0
        %1309 = vmatprep.subr.mxu0 0.0
        %1310 = vmatpush1.xpose.msra.mxu0 0.0
        %1311 = vmatprep.subr.mxu0 0.0
        %1312 = vmatpush1.xpose.msra.mxu0 0.0
        %1313 = vmatprep.subr.mxu0 0.0
        %1314 = vmatpush1.xpose.msra.mxu0 0.0
        %1315 = vmatprep.subr.mxu0 0.0
        %1316 = vmatpush1.xpose.msra.mxu0 0.0
        %1317 = vmatprep.subr.mxu0 0.0
        %1318 = vmatpush1.xpose.msra.mxu0 0.0
        %1319 = vmatprep.subr.mxu0 0.0
        %1320 = vmatpush1.xpose.msra.mxu0 0.0
        %1321 = vmatprep.subr.mxu0 0.0
        %1322 = vmatpush1.xpose.msra.mxu0 0.0
        %1323 = vmatprep.subr.mxu0 0.0
        %1324 = vmatpush1.xpose.msra.mxu0 0.0
        %1325 = vmatprep.subr.mxu0 0.0
        %1326 = vmatpush1.xpose.msra.mxu0 0.0
        %1327 = vmatprep.subr.mxu0 0.0
        %1328 = vmatpush1.xpose.msra.mxu0 0.0
        %1329 = vmatprep.subr.mxu0 0.0
        %1330 = vmatpush1.xpose.msra.mxu0 0.0
        %1331 = vmatprep.subr.mxu0 0.0
        %1332 = vmatpush1.xpose.msra.mxu0 0.0
        %1333 = vmatprep.subr.mxu0 0.0
        %1334 = vmatpush1.xpose.msra.mxu0 0.0
        %1335 = vmatprep.subr.mxu0 0.0
        %1336 = vmatpush1.xpose.msra.mxu0 0.0
        %1337 = vmatprep.subr.mxu0 0.0
        %1338 = vmatpush1.xpose.msra.mxu0 0.0
        %1339 = vmatprep.subr.mxu0 0.0
        %1340 = vmatpush1.xpose.msra.mxu0 0.0
        %1341 = vmatprep.subr.mxu0 0.0
        %1342 = vmatpush1.xpose.msra.mxu0 0.0
        %1343 = vmatprep.subr.mxu0 0.0
        %1344 = vmatpush1.xpose.msra.mxu0 0.0
        %1345 = vmatprep.subr.mxu0 0.0
        %1346 = vmatpush1.xpose.msra.mxu0 0.0
        %1347 = vmatprep.subr.mxu0 0.0
        %1348 = vmatpush1.xpose.msra.mxu0 0.0
        %1349 = vmatprep.mubr.f32.mxu0 0.0
        %1350 = vmatmul.mubr.f32.gmra.mrb[0].mxu0 %v1277
        %v1351 = vpop.f32.mrb[0].mxu0
        %v1352 = vadd.f32 0.0, %v1351
        %v1353 = vpop.f32.mrb[0].mxu0
        %1354 = vmatprep.mubr.f32.mxu0 0.0
        %1355 = vmatmul.mubr.f32.gmra.mrb[0].mxu0 %v1279
        %v1356 = vpop.f32.mrb[0].mxu0
        %v1357 = vadd.f32 0.0, %v1356
        %v1358 = vpop.f32.mrb[0].mxu0
        %1359 = vdwg.mxu0
        %v1360 = vmul.f32 %v1352, 0.17677669
        %v1361 = vmul.f32 %v1357, 0.17677669
        %v1362 = vsel %vm1165, %v1360, -inf
        %1363 = vmax.xlane.f32.xlu0 %v1362
        %v1364 = vpop.xlane.xlu0 %1363
        %v1365 = vsel %vm1165, %v1361, -inf
        %1366 = vmax.xlane.f32.xlu0 %v1365
        %v1367 = vpop.xlane.xlu0 %1366
        %v1368 = vsub.f32 %v1360, %v1364
        %v1369 = vsub.f32 %v1361, %v1367
        %v1370 = vmul.f32 %v1368, 1.442695
        %v1371 = vpow.pop %v1370
        %v1372 = vmul.f32 %v1369, 1.442695
        %v1373 = vpow.pop %v1372
        %v1374 = vsel %vm1165, %v1371, 0.0
        %1375 = vadd.xlane.f32.xlu0 %v1374
        %v1376 = vpop.xlane.xlu0 %1375
        %v1377 = vsel %vm1165, %v1373, 0.0
        %1378 = vadd.xlane.f32.xlu0 %v1377
        %v1379 = vpop.xlane.xlu0 %1378
        %v1380 = vrcp.pop %v1376
        %v1381 = vmul.f32 %v1371, %v1380
        %v1382 = vrcp.pop %v1379
        %v1383 = vmul.f32 %v1373, %v1382
        %1386 = vrot.lane.b32.xlu0 %v1067, 96
        %v1387 = vpop.permute.xlu0 %1386
        %1388 = vrot.lane.b32.xlu0 %v1072, 96
        %v1389 = vpop.permute.xlu0 %1388
        %v1393 = vsel %vm1165, %v1381, 0
        %v1396 = vsel %vm1165, %v1383, 0
        %1398 = vmatprep.subr.mxu0 0.0
        %1399 = vmatpush1.msra.mxu0 %v1387
        %1400 = vmatprep.subr.mxu0 0.0
        %1401 = vmatpush1.msra.mxu0 %v1389
        %1402 = vmatprep.subr.mxu0 0.0
        %1403 = vmatpush1.msra.mxu0 0.0
        %1404 = vmatprep.subr.mxu0 0.0
        %1405 = vmatpush1.msra.mxu0 0.0
        %1406 = vmatprep.subr.mxu0 0.0
        %1407 = vmatpush1.msra.mxu0 0.0
        %1408 = vmatprep.subr.mxu0 0.0
        %1409 = vmatpush1.msra.mxu0 0.0
        %1410 = vmatprep.subr.mxu0 0.0
        %1411 = vmatpush1.msra.mxu0 0.0
        %1412 = vmatprep.subr.mxu0 0.0
        %1413 = vmatpush1.msra.mxu0 0.0
        %1414 = vmatprep.subr.mxu0 0.0
        %1415 = vmatpush1.msra.mxu0 0.0
        %1416 = vmatprep.subr.mxu0 0.0
        %1417 = vmatpush1.msra.mxu0 0.0
        %1418 = vmatprep.subr.mxu0 0.0
        %1419 = vmatpush1.msra.mxu0 0.0
        %1420 = vmatprep.subr.mxu0 0.0
        %1421 = vmatpush1.msra.mxu0 0.0
        %1422 = vmatprep.subr.mxu0 0.0
        %1423 = vmatpush1.msra.mxu0 0.0
        %1424 = vmatprep.subr.mxu0 0.0
        %1425 = vmatpush1.msra.mxu0 0.0
        %1426 = vmatprep.subr.mxu0 0.0
        %1427 = vmatpush1.msra.mxu0 0.0
        %1428 = vmatprep.subr.mxu0 0.0
        %1429 = vmatpush1.msra.mxu0 0.0
        %1430 = vmatprep.subr.mxu0 0.0
        %1431 = vmatpush1.msra.mxu0 0.0
        %1432 = vmatprep.subr.mxu0 0.0
        %1433 = vmatpush1.msra.mxu0 0.0
        %1434 = vmatprep.subr.mxu0 0.0
        %1435 = vmatpush1.msra.mxu0 0.0
        %1436 = vmatprep.subr.mxu0 0.0
        %1437 = vmatpush1.msra.mxu0 0.0
        %1438 = vmatprep.subr.mxu0 0.0
        %1439 = vmatpush1.msra.mxu0 0.0
        %1440 = vmatprep.subr.mxu0 0.0
        %1441 = vmatpush1.msra.mxu0 0.0
        %1442 = vmatprep.subr.mxu0 0.0
        %1443 = vmatpush1.msra.mxu0 0.0
        %1444 = vmatprep.subr.mxu0 0.0
        %1445 = vmatpush1.msra.mxu0 0.0
        %1446 = vmatprep.subr.mxu0 0.0
        %1447 = vmatpush1.msra.mxu0 0.0
        %1448 = vmatprep.subr.mxu0 0.0
        %1449 = vmatpush1.msra.mxu0 0.0
        %1450 = vmatprep.subr.mxu0 0.0
        %1451 = vmatpush1.msra.mxu0 0.0
        %1452 = vmatprep.subr.mxu0 0.0
        %1453 = vmatpush1.msra.mxu0 0.0
        %1454 = vmatprep.subr.mxu0 0.0
        %1455 = vmatpush1.msra.mxu0 0.0
        %1456 = vmatprep.subr.mxu0 0.0
        %1457 = vmatpush1.msra.mxu0 0.0
        %1458 = vmatprep.subr.mxu0 0.0
        %1459 = vmatpush1.msra.mxu0 0.0
        %1460 = vmatprep.subr.mxu0 0.0
        %1461 = vmatpush1.msra.mxu0 0.0
        %1462 = vmatprep.mubr.f32.mxu0 0.0
        %1463 = vmatmul.mubr.f32.gmra.mrb[0].mxu0 %v1393
        %v1464 = vpop.f32.mrb[0].mxu0
        %v1465 = vadd.f32 0.0, %v1464
        %v1466 = vpop.f32.mrb[0].mxu0
        %1467 = vmatprep.mubr.f32.mxu0 0.0
        %1468 = vmatmul.mubr.f32.gmra.mrb[0].mxu0 %v1396
        %v1469 = vpop.f32.mrb[0].mxu0
        %v1470 = vadd.f32 0.0, %v1469
        %v1471 = vpop.f32.mrb[0].mxu0
        %1472 = vdwg.mxu0
        %1473 = vrot.lane.b32.xlu0 %v871, 64
        %v1474 = vpop.permute.xlu0 %1473
        %1475 = vrot.lane.b32.xlu0 %v876, 64
        %v1476 = vpop.permute.xlu0 %1475
        %1477 = vrot.lane.b32.xlu0 %v969, 64
        %v1478 = vpop.permute.xlu0 %1477
        %1479 = vrot.lane.b32.xlu0 %v974, 64
        %v1480 = vpop.permute.xlu0 %1479
        %v1481 = vsel %vm1075, %v1474, 0
        %v1483 = vsel %vm1075, %v1476, 0
        %v1485 = vsel %vm1075, %v1478, 0
        %v1487 = vsel %vm1075, %v1480, 0
        %1489 = vmatprep.subr.mxu0 0.0
        %1490 = vmatpush1.xpose.msra.mxu0 %v1485
        %1491 = vmatprep.subr.mxu0 0.0
        %1492 = vmatpush1.xpose.msra.mxu0 %v1487
        %1493 = vmatprep.subr.mxu0 0.0
        %1494 = vmatpush1.xpose.msra.mxu0 0.0
        %1495 = vmatprep.subr.mxu0 0.0
        %1496 = vmatpush1.xpose.msra.mxu0 0.0
        %1497 = vmatprep.subr.mxu0 0.0
        %1498 = vmatpush1.xpose.msra.mxu0 0.0
        %1499 = vmatprep.subr.mxu0 0.0
        %1500 = vmatpush1.xpose.msra.mxu0 0.0
        %1501 = vmatprep.subr.mxu0 0.0
        %1502 = vmatpush1.xpose.msra.mxu0 0.0
        %1503 = vmatprep.subr.mxu0 0.0
        %1504 = vmatpush1.xpose.msra.mxu0 0.0
        %1505 = vmatprep.subr.mxu0 0.0
        %1506 = vmatpush1.xpose.msra.mxu0 0.0
        %1507 = vmatprep.subr.mxu0 0.0
        %1508 = vmatpush1.xpose.msra.mxu0 0.0
        %1509 = vmatprep.subr.mxu0 0.0
        %1510 = vmatpush1.xpose.msra.mxu0 0.0
        %1511 = vmatprep.subr.mxu0 0.0
        %1512 = vmatpush1.xpose.msra.mxu0 0.0
        %1513 = vmatprep.subr.mxu0 0.0
        %1514 = vmatpush1.xpose.msra.mxu0 0.0
        %1515 = vmatprep.subr.mxu0 0.0
        %1516 = vmatpush1.xpose.msra.mxu0 0.0
        %1517 = vmatprep.subr.mxu0 0.0
        %1518 = vmatpush1.xpose.msra.mxu0 0.0
        %1519 = vmatprep.subr.mxu0 0.0
        %1520 = vmatpush1.xpose.msra.mxu0 0.0
        %1521 = vmatprep.subr.mxu0 0.0
        %1522 = vmatpush1.xpose.msra.mxu0 0.0
        %1523 = vmatprep.subr.mxu0 0.0
        %1524 = vmatpush1.xpose.msra.mxu0 0.0
        %1525 = vmatprep.subr.mxu0 0.0
        %1526 = vmatpush1.xpose.msra.mxu0 0.0
        %1527 = vmatprep.subr.mxu0 0.0
        %1528 = vmatpush1.xpose.msra.mxu0 0.0
        %1529 = vmatprep.subr.mxu0 0.0
        %1530 = vmatpush1.xpose.msra.mxu0 0.0
        %1531 = vmatprep.subr.mxu0 0.0
        %1532 = vmatpush1.xpose.msra.mxu0 0.0
        %1533 = vmatprep.subr.mxu0 0.0
        %1534 = vmatpush1.xpose.msra.mxu0 0.0
        %1535 = vmatprep.subr.mxu0 0.0
        %1536 = vmatpush1.xpose.msra.mxu0 0.0
        %1537 = vmatprep.subr.mxu0 0.0
        %1538 = vmatpush1.xpose.msra.mxu0 0.0
        %1539 = vmatprep.subr.mxu0 0.0
        %1540 = vmatpush1.xpose.msra.mxu0 0.0
        %1541 = vmatprep.subr.mxu0 0.0
        %1542 = vmatpush1.xpose.msra.mxu0 0.0
        %1543 = vmatprep.subr.mxu0 0.0
        %1544 = vmatpush1.xpose.msra.mxu0 0.0
        %1545 = vmatprep.subr.mxu0 0.0
        %1546 = vmatpush1.xpose.msra.mxu0 0.0
        %1547 = vmatprep.subr.mxu0 0.0
        %1548 = vmatpush1.xpose.msra.mxu0 0.0
        %1549 = vmatprep.subr.mxu0 0.0
        %1550 = vmatpush1.xpose.msra.mxu0 0.0
        %1551 = vmatprep.subr.mxu0 0.0
        %1552 = vmatpush1.xpose.msra.mxu0 0.0
        %1553 = vmatprep.mubr.f32.mxu0 0.0
        %1554 = vmatmul.mubr.f32.gmra.mrb[0].mxu0 %v1481
        %v1555 = vpop.f32.mrb[0].mxu0
        %v1556 = vadd.f32 0.0, %v1555
        %v1557 = vpop.f32.mrb[0].mxu0
        %1558 = vmatprep.mubr.f32.mxu0 0.0
        %1559 = vmatmul.mubr.f32.gmra.mrb[0].mxu0 %v1483
        %v1560 = vpop.f32.mrb[0].mxu0
        %v1561 = vadd.f32 0.0, %v1560
        %v1562 = vpop.f32.mrb[0].mxu0
        %1563 = vdwg.mxu0
        %v1564 = vmul.f32 %v1556, 0.17677669
        %v1565 = vmul.f32 %v1561, 0.17677669
        %v1566 = vsel %vm1165, %v1564, -inf
        %1567 = vmax.xlane.f32.xlu0 %v1566
        %v1568 = vpop.xlane.xlu0 %1567
        %v1569 = vsel %vm1165, %v1565, -inf
        %1570 = vmax.xlane.f32.xlu0 %v1569
        %v1571 = vpop.xlane.xlu0 %1570
        %v1572 = vsub.f32 %v1564, %v1568
        %v1573 = vsub.f32 %v1565, %v1571
        %v1574 = vmul.f32 %v1572, 1.442695
        %v1575 = vpow.pop %v1574
        %v1576 = vmul.f32 %v1573, 1.442695
        %v1577 = vpow.pop %v1576
        %v1578 = vsel %vm1165, %v1575, 0.0
        %1579 = vadd.xlane.f32.xlu0 %v1578
        %v1580 = vpop.xlane.xlu0 %1579
        %v1581 = vsel %vm1165, %v1577, 0.0
        %1582 = vadd.xlane.f32.xlu0 %v1581
        %v1583 = vpop.xlane.xlu0 %1582
        %v1584 = vrcp.pop %v1580
        %v1585 = vmul.f32 %v1575, %v1584
        %v1586 = vrcp.pop %v1583
        %v1587 = vmul.f32 %v1577, %v1586
        %1588 = vrot.lane.b32.xlu0 %v1067, 64
        %v1589 = vpop.permute.xlu0 %1588
        %1590 = vrot.lane.b32.xlu0 %v1072, 64
        %v1591 = vpop.permute.xlu0 %1590
        %v1595 = vsel %vm1165, %v1585, 0
        %v1598 = vsel %vm1165, %v1587, 0
        %1600 = vmatprep.subr.mxu0 0.0
        %1601 = vmatpush1.msra.mxu0 %v1589
        %1602 = vmatprep.subr.mxu0 0.0
        %1603 = vmatpush1.msra.mxu0 %v1591
        %1604 = vmatprep.subr.mxu0 0.0
        %1605 = vmatpush1.msra.mxu0 0.0
        %1606 = vmatprep.subr.mxu0 0.0
        %1607 = vmatpush1.msra.mxu0 0.0
        %1608 = vmatprep.subr.mxu0 0.0
        %1609 = vmatpush1.msra.mxu0 0.0
        %1610 = vmatprep.subr.mxu0 0.0
        %1611 = vmatpush1.msra.mxu0 0.0
        %1612 = vmatprep.subr.mxu0 0.0
        %1613 = vmatpush1.msra.mxu0 0.0
        %1614 = vmatprep.subr.mxu0 0.0
        %1615 = vmatpush1.msra.mxu0 0.0
        %1616 = vmatprep.subr.mxu0 0.0
        %1617 = vmatpush1.msra.mxu0 0.0
        %1618 = vmatprep.subr.mxu0 0.0
        %1619 = vmatpush1.msra.mxu0 0.0
        %1620 = vmatprep.subr.mxu0 0.0
        %1621 = vmatpush1.msra.mxu0 0.0
        %1622 = vmatprep.subr.mxu0 0.0
        %1623 = vmatpush1.msra.mxu0 0.0
        %1624 = vmatprep.subr.mxu0 0.0
        %1625 = vmatpush1.msra.mxu0 0.0
        %1626 = vmatprep.subr.mxu0 0.0
        %1627 = vmatpush1.msra.mxu0 0.0
        %1628 = vmatprep.subr.mxu0 0.0
        %1629 = vmatpush1.msra.mxu0 0.0
        %1630 = vmatprep.subr.mxu0 0.0
        %1631 = vmatpush1.msra.mxu0 0.0
        %1632 = vmatprep.subr.mxu0 0.0
        %1633 = vmatpush1.msra.mxu0 0.0
        %1634 = vmatprep.subr.mxu0 0.0
        %1635 = vmatpush1.msra.mxu0 0.0
        %1636 = vmatprep.subr.mxu0 0.0
        %1637 = vmatpush1.msra.mxu0 0.0
        %1638 = vmatprep.subr.mxu0 0.0
        %1639 = vmatpush1.msra.mxu0 0.0
        %1640 = vmatprep.subr.mxu0 0.0
        %1641 = vmatpush1.msra.mxu0 0.0
        %1642 = vmatprep.subr.mxu0 0.0
        %1643 = vmatpush1.msra.mxu0 0.0
        %1644 = vmatprep.subr.mxu0 0.0
        %1645 = vmatpush1.msra.mxu0 0.0
        %1646 = vmatprep.subr.mxu0 0.0
        %1647 = vmatpush1.msra.mxu0 0.0
        %1648 = vmatprep.subr.mxu0 0.0
        %1649 = vmatpush1.msra.mxu0 0.0
        %1650 = vmatprep.subr.mxu0 0.0
        %1651 = vmatpush1.msra.mxu0 0.0
        %1652 = vmatprep.subr.mxu0 0.0
        %1653 = vmatpush1.msra.mxu0 0.0
        %1654 = vmatprep.subr.mxu0 0.0
        %1655 = vmatpush1.msra.mxu0 0.0
        %1656 = vmatprep.subr.mxu0 0.0
        %1657 = vmatpush1.msra.mxu0 0.0
        %1658 = vmatprep.subr.mxu0 0.0
        %1659 = vmatpush1.msra.mxu0 0.0
        %1660 = vmatprep.subr.mxu0 0.0
        %1661 = vmatpush1.msra.mxu0 0.0
        %1662 = vmatprep.subr.mxu0 0.0
        %1663 = vmatpush1.msra.mxu0 0.0
        %1664 = vmatprep.mubr.f32.mxu0 0.0
        %1665 = vmatmul.mubr.f32.gmra.mrb[0].mxu0 %v1595
        %v1666 = vpop.f32.mrb[0].mxu0
        %v1667 = vadd.f32 0.0, %v1666
        %v1668 = vpop.f32.mrb[0].mxu0
        %1669 = vmatprep.mubr.f32.mxu0 0.0
        %1670 = vmatmul.mubr.f32.gmra.mrb[0].mxu0 %v1598
        %v1671 = vpop.f32.mrb[0].mxu0
        %v1672 = vadd.f32 0.0, %v1671
        %v1673 = vpop.f32.mrb[0].mxu0
        %1674 = vdwg.mxu0
        %1675 = vrot.lane.b32.xlu0 %v871, 32
        %v1676 = vpop.permute.xlu0 %1675
        %1677 = vrot.lane.b32.xlu0 %v876, 32
        %v1678 = vpop.permute.xlu0 %1677
        %1679 = vrot.lane.b32.xlu0 %v969, 32
        %v1680 = vpop.permute.xlu0 %1679
        %1681 = vrot.lane.b32.xlu0 %v974, 32
        %v1682 = vpop.permute.xlu0 %1681
        %v1683 = vsel %vm1075, %v1676, 0
        %v1685 = vsel %vm1075, %v1678, 0
        %v1687 = vsel %vm1075, %v1680, 0
        %v1689 = vsel %vm1075, %v1682, 0
        %1691 = vmatprep.subr.mxu0 0.0
        %1692 = vmatpush1.xpose.msra.mxu0 %v1687
        %1693 = vmatprep.subr.mxu0 0.0
        %1694 = vmatpush1.xpose.msra.mxu0 %v1689
        %1695 = vmatprep.subr.mxu0 0.0
        %1696 = vmatpush1.xpose.msra.mxu0 0.0
        %1697 = vmatprep.subr.mxu0 0.0
        %1698 = vmatpush1.xpose.msra.mxu0 0.0
        %1699 = vmatprep.subr.mxu0 0.0
        %1700 = vmatpush1.xpose.msra.mxu0 0.0
        %1701 = vmatprep.subr.mxu0 0.0
        %1702 = vmatpush1.xpose.msra.mxu0 0.0
        %1703 = vmatprep.subr.mxu0 0.0
        %1704 = vmatpush1.xpose.msra.mxu0 0.0
        %1705 = vmatprep.subr.mxu0 0.0
        %1706 = vmatpush1.xpose.msra.mxu0 0.0
        %1707 = vmatprep.subr.mxu0 0.0
        %1708 = vmatpush1.xpose.msra.mxu0 0.0
        %1709 = vmatprep.subr.mxu0 0.0
        %1710 = vmatpush1.xpose.msra.mxu0 0.0
        %1711 = vmatprep.subr.mxu0 0.0
        %1712 = vmatpush1.xpose.msra.mxu0 0.0
        %1713 = vmatprep.subr.mxu0 0.0
        %1714 = vmatpush1.xpose.msra.mxu0 0.0
        %1715 = vmatprep.subr.mxu0 0.0
        %1716 = vmatpush1.xpose.msra.mxu0 0.0
        %1717 = vmatprep.subr.mxu0 0.0
        %1718 = vmatpush1.xpose.msra.mxu0 0.0
        %1719 = vmatprep.subr.mxu0 0.0
        %1720 = vmatpush1.xpose.msra.mxu0 0.0
        %1721 = vmatprep.subr.mxu0 0.0
        %1722 = vmatpush1.xpose.msra.mxu0 0.0
        %1723 = vmatprep.subr.mxu0 0.0
        %1724 = vmatpush1.xpose.msra.mxu0 0.0
        %1725 = vmatprep.subr.mxu0 0.0
        %1726 = vmatpush1.xpose.msra.mxu0 0.0
        %1727 = vmatprep.subr.mxu0 0.0
        %1728 = vmatpush1.xpose.msra.mxu0 0.0
        %1729 = vmatprep.subr.mxu0 0.0
        %1730 = vmatpush1.xpose.msra.mxu0 0.0
        %1731 = vmatprep.subr.mxu0 0.0
        %1732 = vmatpush1.xpose.msra.mxu0 0.0
        %1733 = vmatprep.subr.mxu0 0.0
        %1734 = vmatpush1.xpose.msra.mxu0 0.0
        %1735 = vmatprep.subr.mxu0 0.0
        %1736 = vmatpush1.xpose.msra.mxu0 0.0
        %1737 = vmatprep.subr.mxu0 0.0
        %1738 = vmatpush1.xpose.msra.mxu0 0.0
        %1739 = vmatprep.subr.mxu0 0.0
        %1740 = vmatpush1.xpose.msra.mxu0 0.0
        %1741 = vmatprep.subr.mxu0 0.0
        %1742 = vmatpush1.xpose.msra.mxu0 0.0
        %1743 = vmatprep.subr.mxu0 0.0
        %1744 = vmatpush1.xpose.msra.mxu0 0.0
        %1745 = vmatprep.subr.mxu0 0.0
        %1746 = vmatpush1.xpose.msra.mxu0 0.0
        %1747 = vmatprep.subr.mxu0 0.0
        %1748 = vmatpush1.xpose.msra.mxu0 0.0
        %1749 = vmatprep.subr.mxu0 0.0
        %1750 = vmatpush1.xpose.msra.mxu0 0.0
        %1751 = vmatprep.subr.mxu0 0.0
        %1752 = vmatpush1.xpose.msra.mxu0 0.0
        %1753 = vmatprep.subr.mxu0 0.0
        %1754 = vmatpush1.xpose.msra.mxu0 0.0
        %1755 = vmatprep.mubr.f32.mxu0 0.0
        %1756 = vmatmul.mubr.f32.gmra.mrb[0].mxu0 %v1683
        %v1757 = vpop.f32.mrb[0].mxu0
        %v1758 = vadd.f32 0.0, %v1757
        %v1759 = vpop.f32.mrb[0].mxu0
        %1760 = vmatprep.mubr.f32.mxu0 0.0
        %1761 = vmatmul.mubr.f32.gmra.mrb[0].mxu0 %v1685
        %v1762 = vpop.f32.mrb[0].mxu0
        %v1763 = vadd.f32 0.0, %v1762
        %v1764 = vpop.f32.mrb[0].mxu0
        %1765 = vdwg.mxu0
        %v1766 = vmul.f32 %v1758, 0.17677669
        %v1767 = vmul.f32 %v1763, 0.17677669
        %v1768 = vsel %vm1165, %v1766, -inf
        %1769 = vmax.xlane.f32.xlu0 %v1768
        %v1770 = vpop.xlane.xlu0 %1769
        %v1771 = vsel %vm1165, %v1767, -inf
        %1772 = vmax.xlane.f32.xlu0 %v1771
        %v1773 = vpop.xlane.xlu0 %1772
        %v1774 = vsub.f32 %v1766, %v1770
        %v1775 = vsub.f32 %v1767, %v1773
        %v1776 = vmul.f32 %v1774, 1.442695
        %v1777 = vpow.pop %v1776
        %v1778 = vmul.f32 %v1775, 1.442695
        %v1779 = vpow.pop %v1778
        %v1780 = vsel %vm1165, %v1777, 0.0
        %1781 = vadd.xlane.f32.xlu0 %v1780
        %v1782 = vpop.xlane.xlu0 %1781
        %v1783 = vsel %vm1165, %v1779, 0.0
        %1784 = vadd.xlane.f32.xlu0 %v1783
        %v1785 = vpop.xlane.xlu0 %1784
        %v1786 = vrcp.pop %v1782
        %v1787 = vmul.f32 %v1777, %v1786
        %v1788 = vrcp.pop %v1785
        %v1789 = vmul.f32 %v1779, %v1788
        %1790 = vrot.lane.b32.xlu0 %v1067, 32
        %v1791 = vpop.permute.xlu0 %1790
        %1792 = vrot.lane.b32.xlu0 %v1072, 32
        %v1793 = vpop.permute.xlu0 %1792
        %v1797 = vsel %vm1165, %v1787, 0
        %v1800 = vsel %vm1165, %v1789, 0
        %1802 = vmatprep.subr.mxu0 0.0
        %1803 = vmatpush1.msra.mxu0 %v1791
        %1804 = vmatprep.subr.mxu0 0.0
        %1805 = vmatpush1.msra.mxu0 %v1793
        %1806 = vmatprep.subr.mxu0 0.0
        %1807 = vmatpush1.msra.mxu0 0.0
        %1808 = vmatprep.subr.mxu0 0.0
        %1809 = vmatpush1.msra.mxu0 0.0
        %1810 = vmatprep.subr.mxu0 0.0
        %1811 = vmatpush1.msra.mxu0 0.0
        %1812 = vmatprep.subr.mxu0 0.0
        %1813 = vmatpush1.msra.mxu0 0.0
        %1814 = vmatprep.subr.mxu0 0.0
        %1815 = vmatpush1.msra.mxu0 0.0
        %1816 = vmatprep.subr.mxu0 0.0
        %1817 = vmatpush1.msra.mxu0 0.0
        %1818 = vmatprep.subr.mxu0 0.0
        %1819 = vmatpush1.msra.mxu0 0.0
        %1820 = vmatprep.subr.mxu0 0.0
        %1821 = vmatpush1.msra.mxu0 0.0
        %1822 = vmatprep.subr.mxu0 0.0
        %1823 = vmatpush1.msra.mxu0 0.0
        %1824 = vmatprep.subr.mxu0 0.0
        %1825 = vmatpush1.msra.mxu0 0.0
        %1826 = vmatprep.subr.mxu0 0.0
        %1827 = vmatpush1.msra.mxu0 0.0
        %1828 = vmatprep.subr.mxu0 0.0
        %1829 = vmatpush1.msra.mxu0 0.0
        %1830 = vmatprep.subr.mxu0 0.0
        %1831 = vmatpush1.msra.mxu0 0.0
        %1832 = vmatprep.subr.mxu0 0.0
        %1833 = vmatpush1.msra.mxu0 0.0
        %1834 = vmatprep.subr.mxu0 0.0
        %1835 = vmatpush1.msra.mxu0 0.0
        %1836 = vmatprep.subr.mxu0 0.0
        %1837 = vmatpush1.msra.mxu0 0.0
        %1838 = vmatprep.subr.mxu0 0.0
        %1839 = vmatpush1.msra.mxu0 0.0
        %1840 = vmatprep.subr.mxu0 0.0
        %1841 = vmatpush1.msra.mxu0 0.0
        %1842 = vmatprep.subr.mxu0 0.0
        %1843 = vmatpush1.msra.mxu0 0.0
        %1844 = vmatprep.subr.mxu0 0.0
        %1845 = vmatpush1.msra.mxu0 0.0
        %1846 = vmatprep.subr.mxu0 0.0
        %1847 = vmatpush1.msra.mxu0 0.0
        %1848 = vmatprep.subr.mxu0 0.0
        %1849 = vmatpush1.msra.mxu0 0.0
        %1850 = vmatprep.subr.mxu0 0.0
        %1851 = vmatpush1.msra.mxu0 0.0
        %1852 = vmatprep.subr.mxu0 0.0
        %1853 = vmatpush1.msra.mxu0 0.0
        %1854 = vmatprep.subr.mxu0 0.0
        %1855 = vmatpush1.msra.mxu0 0.0
        %1856 = vmatprep.subr.mxu0 0.0
        %1857 = vmatpush1.msra.mxu0 0.0
        %1858 = vmatprep.subr.mxu0 0.0
        %1859 = vmatpush1.msra.mxu0 0.0
        %1860 = vmatprep.subr.mxu0 0.0
        %1861 = vmatpush1.msra.mxu0 0.0
        %1862 = vmatprep.subr.mxu0 0.0
        %1863 = vmatpush1.msra.mxu0 0.0
        %1864 = vmatprep.subr.mxu0 0.0
        %1865 = vmatpush1.msra.mxu0 0.0
        %1866 = vmatprep.mubr.f32.mxu0 0.0
        %1867 = vmatmul.mubr.f32.gmra.mrb[0].mxu0 %v1797
        %v1868 = vpop.f32.mrb[0].mxu0
        %v1869 = vadd.f32 0.0, %v1868
        %v1870 = vpop.f32.mrb[0].mxu0
        %1871 = vmatprep.mubr.f32.mxu0 0.0
        %1872 = vmatmul.mubr.f32.gmra.mrb[0].mxu0 %v1800
        %v1873 = vpop.f32.mrb[0].mxu0
        %v1874 = vadd.f32 0.0, %v1873
        %v1875 = vpop.f32.mrb[0].mxu0
        %1876 = vdwg.mxu0
        %1879 = vrot.lane.b32.xlu0 %v1465, 32
        %v1880 = vpop.permute.xlu0 %1879
        %1881 = vrot.lane.b32.xlu0 %v1470, 32
        %v1882 = vpop.permute.xlu0 %1881
        %1887 = vrot.lane.b32.xlu0 %v1667, 64
        %v1888 = vpop.permute.xlu0 %1887
        %1889 = vrot.lane.b32.xlu0 %v1672, 64
        %v1890 = vpop.permute.xlu0 %1889
        %1895 = vrot.lane.b32.xlu0 %v1869, 96
        %v1896 = vpop.permute.xlu0 %1895
        %1897 = vrot.lane.b32.xlu0 %v1874, 96
        %v1898 = vpop.permute.xlu0 %1897
        %v1901 = vsel %vm1075, %v1261, %v1880
        %v1902 = vsel %vm1075, %v1266, %v1882
        %vm1903 = vcmask 523264
        %v1904 = vsel %vm1903, %v1901, %v1888
        %v1905 = vsel %vm1903, %v1902, %v1890
        %vm1906 = vcmask 785408
        %v1907 = vsel %vm1906, %v1904, %v1896
        %v1908 = vsel %vm1906, %v1905, %v1898
        %v1909 = vld [vmem:[#allocation14] sm:$0xff]
        %v1910 = vld [vmem:[#allocation14 + $0x8] sm:$0xff]
        %v1911 = vld [vmem:[#allocation14 + $0x10] sm:$0xff]
        %v1912 = vld [vmem:[#allocation14 + $0x18] sm:$0xff]
        %v1913 = vld [vmem:[#allocation14 + $0x20] sm:$0xff]
        %v1914 = vld [vmem:[#allocation14 + $0x28] sm:$0xff]
        %v1915 = vld [vmem:[#allocation14 + $0x30] sm:$0xff]
        %v1916 = vld [vmem:[#allocation14 + $0x38] sm:$0xff]
        %v1917 = vld [vmem:[#allocation14 + $0x40] sm:$0xff]
        %v1918 = vld [vmem:[#allocation14 + $0x48] sm:$0xff]
        %v1919 = vld [vmem:[#allocation14 + $0x50] sm:$0xff]
        %v1920 = vld [vmem:[#allocation14 + $0x58] sm:$0xff]
        %v1921 = vld [vmem:[#allocation14 + $0x60] sm:$0xff]
        %v1922 = vld [vmem:[#allocation14 + $0x68] sm:$0xff]
        %v1923 = vld [vmem:[#allocation14 + $0x70] sm:$0xff]
        %v1924 = vld [vmem:[#allocation14 + $0x78] sm:$0xff]
        %v1925 = vld [vmem:[#allocation16] sm:$0x1]
        %v1927 = vlaneseq
        %v1928 = vshrl.u32 %v1927, 7
        %v1929 = vsub.s32 0, %v1928
        %v1930 = vrot.slane %v1925, %v1929
        %1932 = vmatprep.subr.mxu0 0.0
        %1933 = vmatpush1.msra.mxu0 %v1909
        %1934 = vmatprep.subr.mxu0 0.0
        %1935 = vmatpush1.msra.mxu0 %v1910
        %1936 = vmatprep.subr.mxu0 0.0
        %1937 = vmatpush1.msra.mxu0 %v1911
        %1938 = vmatprep.subr.mxu0 0.0
        %1939 = vmatpush1.msra.mxu0 %v1912
        %1940 = vmatprep.subr.mxu0 0.0
        %1941 = vmatpush1.msra.mxu0 %v1913
        %1942 = vmatprep.subr.mxu0 0.0
        %1943 = vmatpush1.msra.mxu0 %v1914
        %1944 = vmatprep.subr.mxu0 0.0
        %1945 = vmatpush1.msra.mxu0 %v1915
        %1946 = vmatprep.subr.mxu0 0.0
        %1947 = vmatpush1.msra.mxu0 %v1916
        %1948 = vmatprep.subr.mxu0 0.0
        %1949 = vmatpush1.msra.mxu0 %v1917
        %1950 = vmatprep.subr.mxu0 0.0
        %1951 = vmatpush1.msra.mxu0 %v1918
        %1952 = vmatprep.subr.mxu0 0.0
        %1953 = vmatpush1.msra.mxu0 %v1919
        %1954 = vmatprep.subr.mxu0 0.0
        %1955 = vmatpush1.msra.mxu0 %v1920
        %1956 = vmatprep.subr.mxu0 0.0
        %1957 = vmatpush1.msra.mxu0 %v1921
        %1958 = vmatprep.subr.mxu0 0.0
        %1959 = vmatpush1.msra.mxu0 %v1922
        %1960 = vmatprep.subr.mxu0 0.0
        %1961 = vmatpush1.msra.mxu0 %v1923
        %1962 = vmatprep.subr.mxu0 0.0
        %1963 = vmatpush1.msra.mxu0 %v1924
        %1964 = vmatprep.subr.mxu0 0.0
        %1965 = vmatpush1.msra.mxu0 0.0
        %1966 = vmatprep.subr.mxu0 0.0
        %1967 = vmatpush1.msra.mxu0 0.0
        %1968 = vmatprep.subr.mxu0 0.0
        %1969 = vmatpush1.msra.mxu0 0.0
        %1970 = vmatprep.subr.mxu0 0.0
        %1971 = vmatpush1.msra.mxu0 0.0
        %1972 = vmatprep.subr.mxu0 0.0
        %1973 = vmatpush1.msra.mxu0 0.0
        %1974 = vmatprep.subr.mxu0 0.0
        %1975 = vmatpush1.msra.mxu0 0.0
        %1976 = vmatprep.subr.mxu0 0.0
        %1977 = vmatpush1.msra.mxu0 0.0
        %1978 = vmatprep.subr.mxu0 0.0
        %1979 = vmatpush1.msra.mxu0 0.0
        %1980 = vmatprep.subr.mxu0 0.0
        %1981 = vmatpush1.msra.mxu0 0.0
        %1982 = vmatprep.subr.mxu0 0.0
        %1983 = vmatpush1.msra.mxu0 0.0
        %1984 = vmatprep.subr.mxu0 0.0
        %1985 = vmatpush1.msra.mxu0 0.0
        %1986 = vmatprep.subr.mxu0 0.0
        %1987 = vmatpush1.msra.mxu0 0.0
        %1988 = vmatprep.subr.mxu0 0.0
        %1989 = vmatpush1.msra.mxu0 0.0
        %1990 = vmatprep.subr.mxu0 0.0
        %1991 = vmatpush1.msra.mxu0 0.0
        %1992 = vmatprep.subr.mxu0 0.0
        %1993 = vmatpush1.msra.mxu0 0.0
        %1994 = vmatprep.subr.mxu0 0.0
        %1995 = vmatpush1.msra.mxu0 0.0
        %1996 = vmatprep.mubr.f32.mxu0 0.0
        %1997 = vmatmul.mubr.f32.gmra.mrb[0].mxu0 %v1907
        %v1998 = vpop.f32.mrb[0].mxu0
        %v1999 = vadd.f32 %v1930, %v1998
        %v2000 = vpop.f32.mrb[0].mxu0
        %2001 = vmatprep.mubr.f32.mxu0 0.0
        %2002 = vmatmul.mubr.f32.gmra.mrb[0].mxu0 %v1908
        %v2003 = vpop.f32.mrb[0].mxu0
        %v2004 = vadd.f32 %v1930, %v2003
        %v2005 = vpop.f32.mrb[0].mxu0
        %2006 = vdwg.mxu0
        %v2007 = vadd.f32 %v779, %v1999
        %v2008 = vadd.f32 %v780, %v2004
        %v2009 = vld [vmem:[#allocation17] sm:$0x1]
        %v2010 = vld [vmem:[#allocation19] sm:$0x1]
        %2011 = vadd.xlane.f32.xlu0 %v2007
        %v2012 = vpop.xlane.xlu0 %2011
        %2013 = vadd.xlane.f32.xlu0 %v2008
        %v2014 = vpop.xlane.xlu0 %2013
        %v2015 = vrcp.pop 128.0
        %v2016 = vmul.f32 %v2012, %v2015
        %v2017 = vmul.f32 %v2014, %v2015
        %v2018 = vsub.f32 %v2007, %v2016
        %v2019 = vsub.f32 %v2008, %v2017
        %v2020 = vmul.f32 %v2018, %v2018
        %v2021 = vmul.f32 %v2019, %v2019
        %2022 = vadd.xlane.f32.xlu0 %v2020
        %v2023 = vpop.xlane.xlu0 %2022
        %2024 = vadd.xlane.f32.xlu0 %v2021
        %v2025 = vpop.xlane.xlu0 %2024
        %v2026 = vmul.f32 %v2023, %v2015
        %v2027 = vmul.f32 %v2025, %v2015
        %v2028 = vadd.f32 %v2026, 1e-05
        %v2029 = vadd.f32 %v2027, 1e-05
        %v2030 = vrsqrt.pop %v2028
        %v2031 = vrsqrt.pop %v2029
        %v2032 = vmul.f32 %v2018, %v2030
        %v2033 = vmul.f32 %v2019, %v2031
        %v2035 = vlaneseq
        %v2036 = vshrl.u32 %v2035, 7
        %v2037 = vsub.s32 0, %v2036
        %v2038 = vrot.slane %v2009, %v2037
        %v2040 = vmul.f32 %v2032, %v2038
        %v2041 = vmul.f32 %v2033, %v2038
        %v2043 = vlaneseq
        %v2044 = vshrl.u32 %v2043, 7
        %v2045 = vsub.s32 0, %v2044
        %v2046 = vrot.slane %v2010, %v2045
        %v2048 = vadd.f32 %v2040, %v2046
        %v2049 = vadd.f32 %v2041, %v2046
        %v2050 = vld [vmem:[#allocation20] sm:$0xff]
        %v2051 = vld [vmem:[#allocation20 + $0x8] sm:$0xff]
        %v2052 = vld [vmem:[#allocation20 + $0x10] sm:$0xff]
        %v2053 = vld [vmem:[#allocation20 + $0x18] sm:$0xff]
        %v2054 = vld [vmem:[#allocation20 + $0x20] sm:$0xff]
        %v2055 = vld [vmem:[#allocation20 + $0x28] sm:$0xff]
        %v2056 = vld [vmem:[#allocation20 + $0x30] sm:$0xff]
        %v2057 = vld [vmem:[#allocation20 + $0x38] sm:$0xff]
        %v2058 = vld [vmem:[#allocation20 + $0x40] sm:$0xff]
        %v2059 = vld [vmem:[#allocation20 + $0x48] sm:$0xff]
        %v2060 = vld [vmem:[#allocation20 + $0x50] sm:$0xff]
        %v2061 = vld [vmem:[#allocation20 + $0x58] sm:$0xff]
        %v2062 = vld [vmem:[#allocation20 + $0x60] sm:$0xff]
        %v2063 = vld [vmem:[#allocation20 + $0x68] sm:$0xff]
        %v2064 = vld [vmem:[#allocation20 + $0x70] sm:$0xff]
        %v2065 = vld [vmem:[#allocation20 + $0x78] sm:$0xff]
        %v2066 = vld [vmem:[#allocation20 + $0x80] sm:$0xff]
        %v2067 = vld [vmem:[#allocation20 + $0x88] sm:$0xff]
        %v2068 = vld [vmem:[#allocation20 + $0x90] sm:$0xff]
        %v2069 = vld [vmem:[#allocation20 + $0x98] sm:$0xff]
        %v2070 = vld [vmem:[#allocation20 + $0xa0] sm:$0xff]
        %v2071 = vld [vmem:[#allocation20 + $0xa8] sm:$0xff]
        %v2072 = vld [vmem:[#allocation20 + $0xb0] sm:$0xff]
        %v2073 = vld [vmem:[#allocation20 + $0xb8] sm:$0xff]
        %v2074 = vld [vmem:[#allocation20 + $0xc0] sm:$0xff]
        %v2075 = vld [vmem:[#allocation20 + $0xc8] sm:$0xff]
        %v2076 = vld [vmem:[#allocation20 + $0xd0] sm:$0xff]
        %v2077 = vld [vmem:[#allocation20 + $0xd8] sm:$0xff]
        %v2078 = vld [vmem:[#allocation20 + $0xe0] sm:$0xff]
        %v2079 = vld [vmem:[#allocation20 + $0xe8] sm:$0xff]
        %v2080 = vld [vmem:[#allocation20 + $0xf0] sm:$0xff]
        %v2081 = vld [vmem:[#allocation20 + $0xf8] sm:$0xff]
        %v2082 = vld [vmem:[#allocation22] sm:$0x3]
        %v2084 = vlaneseq
        %v2085 = vshrl.u32 %v2084, 7
        %v2086 = vsub.s32 0, %v2085
        %v2087 = vrot.slane %v2082, %v2086
        %v2088 = vlaneseq
        %v2089 = vshrl.u32 %v2088, 7
        %v2090 = vsub.s32 1, %v2089
        %v2091 = vrot.slane %v2082, %v2090
        %2094 = vmatprep.subr.mxu0 %v2051
        %2095 = vmatpush1.msra.mxu0 %v2050
        %2096 = vmatprep.subr.mxu0 %v2053
        %2097 = vmatpush1.msra.mxu0 %v2052
        %2098 = vmatprep.subr.mxu0 %v2055
        %2099 = vmatpush1.msra.mxu0 %v2054
        %2100 = vmatprep.subr.mxu0 %v2057
        %2101 = vmatpush1.msra.mxu0 %v2056
        %2102 = vmatprep.subr.mxu0 %v2059
        %2103 = vmatpush1.msra.mxu0 %v2058
        %2104 = vmatprep.subr.mxu0 %v2061
        %2105 = vmatpush1.msra.mxu0 %v2060
        %2106 = vmatprep.subr.mxu0 %v2063
        %2107 = vmatpush1.msra.mxu0 %v2062
        %2108 = vmatprep.subr.mxu0 %v2065
        %2109 = vmatpush1.msra.mxu0 %v2064
        %2110 = vmatprep.subr.mxu0 %v2067
        %2111 = vmatpush1.msra.mxu0 %v2066
        %2112 = vmatprep.subr.mxu0 %v2069
        %2113 = vmatpush1.msra.mxu0 %v2068
        %2114 = vmatprep.subr.mxu0 %v2071
        %2115 = vmatpush1.msra.mxu0 %v2070
        %2116 = vmatprep.subr.mxu0 %v2073
        %2117 = vmatpush1.msra.mxu0 %v2072
        %2118 = vmatprep.subr.mxu0 %v2075
        %2119 = vmatpush1.msra.mxu0 %v2074
        %2120 = vmatprep.subr.mxu0 %v2077
        %2121 = vmatpush1.msra.mxu0 %v2076
        %2122 = vmatprep.subr.mxu0 %v2079
        %2123 = vmatpush1.msra.mxu0 %v2078
        %2124 = vmatprep.subr.mxu0 %v2081
        %2125 = vmatpush1.msra.mxu0 %v2080
        %2126 = vmatprep.subr.mxu0 0.0
        %2127 = vmatpush1.msra.mxu0 0.0
        %2128 = vmatprep.subr.mxu0 0.0
        %2129 = vmatpush1.msra.mxu0 0.0
        %2130 = vmatprep.subr.mxu0 0.0
        %2131 = vmatpush1.msra.mxu0 0.0
        %2132 = vmatprep.subr.mxu0 0.0
        %2133 = vmatpush1.msra.mxu0 0.0
        %2134 = vmatprep.subr.mxu0 0.0
        %2135 = vmatpush1.msra.mxu0 0.0
        %2136 = vmatprep.subr.mxu0 0.0
        %2137 = vmatpush1.msra.mxu0 0.0
        %2138 = vmatprep.subr.mxu0 0.0
        %2139 = vmatpush1.msra.mxu0 0.0
        %2140 = vmatprep.subr.mxu0 0.0
        %2141 = vmatpush1.msra.mxu0 0.0
        %2142 = vmatprep.subr.mxu0 0.0
        %2143 = vmatpush1.msra.mxu0 0.0
        %2144 = vmatprep.subr.mxu0 0.0
        %2145 = vmatpush1.msra.mxu0 0.0
        %2146 = vmatprep.subr.mxu0 0.0
        %2147 = vmatpush1.msra.mxu0 0.0
        %2148 = vmatprep.subr.mxu0 0.0
        %2149 = vmatpush1.msra.mxu0 0.0
        %2150 = vmatprep.subr.mxu0 0.0
        %2151 = vmatpush1.msra.mxu0 0.0
        %2152 = vmatprep.subr.mxu0 0.0
        %2153 = vmatpush1.msra.mxu0 0.0
        %2154 = vmatprep.subr.mxu0 0.0
        %2155 = vmatpush1.msra.mxu0 0.0
        %2156 = vmatprep.subr.mxu0 0.0
        %2157 = vmatpush1.msra.mxu0 0.0
        %2158 = vmatprep.mubr.f32.mxu0 0.0
        %2159 = vmatmul.mubr.f32.gmra.mrb[0].mxu0 %v2048
        %v2160 = vpop.f32.mrb[0].mxu0
        %v2161 = vadd.f32 %v2087, %v2160
        %v2162 = vpop.f32.mrb[0].mxu0
        %v2163 = vadd.f32 %v2091, %v2162
        %2164 = vmatprep.mubr.f32.mxu0 0.0
        %2165 = vmatmul.mubr.f32.gmra.mrb[0].mxu0 %v2049
        %v2166 = vpop.f32.mrb[0].mxu0
        %v2167 = vadd.f32 %v2087, %v2166
        %v2168 = vpop.f32.mrb[0].mxu0
        %v2169 = vadd.f32 %v2091, %v2168
        %2170 = vdwg.mxu0
        %v2171 = vmax.f32 %v2161, 0.0
        %v2172 = vmax.f32 %v2163, 0.0
        %v2173 = vmax.f32 %v2167, 0.0
        %v2174 = vmax.f32 %v2169, 0.0
        %v2175 = vld [vmem:[#allocation23] sm:$0xff]
        %v2176 = vld [vmem:[#allocation23 + $0x8] sm:$0xff]
        %v2177 = vld [vmem:[#allocation23 + $0x10] sm:$0xff]
        %v2178 = vld [vmem:[#allocation23 + $0x18] sm:$0xff]
        %v2179 = vld [vmem:[#allocation23 + $0x20] sm:$0xff]
        %v2180 = vld [vmem:[#allocation23 + $0x28] sm:$0xff]
        %v2181 = vld [vmem:[#allocation23 + $0x30] sm:$0xff]
        %v2182 = vld [vmem:[#allocation23 + $0x38] sm:$0xff]
        %v2183 = vld [vmem:[#allocation23 + $0x40] sm:$0xff]
        %v2184 = vld [vmem:[#allocation23 + $0x48] sm:$0xff]
        %v2185 = vld [vmem:[#allocation23 + $0x50] sm:$0xff]
        %v2186 = vld [vmem:[#allocation23 + $0x58] sm:$0xff]
        %v2187 = vld [vmem:[#allocation23 + $0x60] sm:$0xff]
        %v2188 = vld [vmem:[#allocation23 + $0x68] sm:$0xff]
        %v2189 = vld [vmem:[#allocation23 + $0x70] sm:$0xff]
        %v2190 = vld [vmem:[#allocation23 + $0x78] sm:$0xff]
        %v2191 = vld [vmem:[#allocation23 + $0x80] sm:$0xff]
        %v2192 = vld [vmem:[#allocation23 + $0x88] sm:$0xff]
        %v2193 = vld [vmem:[#allocation23 + $0x90] sm:$0xff]
        %v2194 = vld [vmem:[#allocation23 + $0x98] sm:$0xff]
        %v2195 = vld [vmem:[#allocation23 + $0xa0] sm:$0xff]
        %v2196 = vld [vmem:[#allocation23 + $0xa8] sm:$0xff]
        %v2197 = vld [vmem:[#allocation23 + $0xb0] sm:$0xff]
        %v2198 = vld [vmem:[#allocation23 + $0xb8] sm:$0xff]
        %v2199 = vld [vmem:[#allocation23 + $0xc0] sm:$0xff]
        %v2200 = vld [vmem:[#allocation23 + $0xc8] sm:$0xff]
        %v2201 = vld [vmem:[#allocation23 + $0xd0] sm:$0xff]
        %v2202 = vld [vmem:[#allocation23 + $0xd8] sm:$0xff]
        %v2203 = vld [vmem:[#allocation23 + $0xe0] sm:$0xff]
        %v2204 = vld [vmem:[#allocation23 + $0xe8] sm:$0xff]
        %v2205 = vld [vmem:[#allocation23 + $0xf0] sm:$0xff]
        %v2206 = vld [vmem:[#allocation23 + $0xf8] sm:$0xff]
        %v2207 = vld [vmem:[#allocation25] sm:$0x1]
        %v2209 = vlaneseq
        %v2210 = vshrl.u32 %v2209, 7
        %v2211 = vsub.s32 0, %v2210
        %v2212 = vrot.slane %v2207, %v2211
        %2214 = vmatprep.subr.mxu0 0.0
        %2215 = vmatpush1.msra.mxu0 %v2175
        %2216 = vmatprep.subr.mxu0 0.0
        %2217 = vmatpush1.msra.mxu0 %v2176
        %2218 = vmatprep.subr.mxu0 0.0
        %2219 = vmatpush1.msra.mxu0 %v2177
        %2220 = vmatprep.subr.mxu0 0.0
        %2221 = vmatpush1.msra.mxu0 %v2178
        %2222 = vmatprep.subr.mxu0 0.0
        %2223 = vmatpush1.msra.mxu0 %v2179
        %2224 = vmatprep.subr.mxu0 0.0
        %2225 = vmatpush1.msra.mxu0 %v2180
        %2226 = vmatprep.subr.mxu0 0.0
        %2227 = vmatpush1.msra.mxu0 %v2181
        %2228 = vmatprep.subr.mxu0 0.0
        %2229 = vmatpush1.msra.mxu0 %v2182
        %2230 = vmatprep.subr.mxu0 0.0
        %2231 = vmatpush1.msra.mxu0 %v2183
        %2232 = vmatprep.subr.mxu0 0.0
        %2233 = vmatpush1.msra.mxu0 %v2184
        %2234 = vmatprep.subr.mxu0 0.0
        %2235 = vmatpush1.msra.mxu0 %v2185
        %2236 = vmatprep.subr.mxu0 0.0
        %2237 = vmatpush1.msra.mxu0 %v2186
        %2238 = vmatprep.subr.mxu0 0.0
        %2239 = vmatpush1.msra.mxu0 %v2187
        %2240 = vmatprep.subr.mxu0 0.0
        %2241 = vmatpush1.msra.mxu0 %v2188
        %2242 = vmatprep.subr.mxu0 0.0
        %2243 = vmatpush1.msra.mxu0 %v2189
        %2244 = vmatprep.subr.mxu0 0.0
        %2245 = vmatpush1.msra.mxu0 %v2190
        %2246 = vmatprep.subr.mxu0 0.0
        %2247 = vmatpush1.msra.mxu0 %v2191
        %2248 = vmatprep.subr.mxu0 0.0
        %2249 = vmatpush1.msra.mxu0 %v2192
        %2250 = vmatprep.subr.mxu0 0.0
        %2251 = vmatpush1.msra.mxu0 %v2193
        %2252 = vmatprep.subr.mxu0 0.0
        %2253 = vmatpush1.msra.mxu0 %v2194
        %2254 = vmatprep.subr.mxu0 0.0
        %2255 = vmatpush1.msra.mxu0 %v2195
        %2256 = vmatprep.subr.mxu0 0.0
        %2257 = vmatpush1.msra.mxu0 %v2196
        %2258 = vmatprep.subr.mxu0 0.0
        %2259 = vmatpush1.msra.mxu0 %v2197
        %2260 = vmatprep.subr.mxu0 0.0
        %2261 = vmatpush1.msra.mxu0 %v2198
        %2262 = vmatprep.subr.mxu0 0.0
        %2263 = vmatpush1.msra.mxu0 %v2199
        %2264 = vmatprep.subr.mxu0 0.0
        %2265 = vmatpush1.msra.mxu0 %v2200
        %2266 = vmatprep.subr.mxu0 0.0
        %2267 = vmatpush1.msra.mxu0 %v2201
        %2268 = vmatprep.subr.mxu0 0.0
        %2269 = vmatpush1.msra.mxu0 %v2202
        %2270 = vmatprep.subr.mxu0 0.0
        %2271 = vmatpush1.msra.mxu0 %v2203
        %2272 = vmatprep.subr.mxu0 0.0
        %2273 = vmatpush1.msra.mxu0 %v2204
        %2274 = vmatprep.subr.mxu0 0.0
        %2275 = vmatpush1.msra.mxu0 %v2205
        %2276 = vmatprep.subr.mxu0 0.0
        %2277 = vmatpush1.msra.mxu0 %v2206
        %2278 = vmatprep.mubr.f32.mxu0 %v2172
        %2279 = vmatmul.mubr.f32.gmra.mrb[0].mxu0 %v2171
        %v2280 = vpop.f32.mrb[0].mxu0
        %v2281 = vadd.f32 %v2212, %v2280
        %v2282 = vpop.f32.mrb[0].mxu0
        %2283 = vmatprep.mubr.f32.mxu0 %v2174
        %2284 = vmatmul.mubr.f32.gmra.mrb[0].mxu0 %v2173
        %v2285 = vpop.f32.mrb[0].mxu0
        %v2286 = vadd.f32 %v2212, %v2285
        %v2287 = vpop.f32.mrb[0].mxu0
        %2288 = vdwg.mxu0
        %v2289 = vadd.f32 %v2048, %v2281
        %v2290 = vadd.f32 %v2049, %v2286
        %v2291 = vld [vmem:[#allocation26] sm:$0x1]
        %v2292 = vld [vmem:[#allocation28] sm:$0x1]
        %2293 = vadd.xlane.f32.xlu0 %v2289
        %v2294 = vpop.xlane.xlu0 %2293
        %2295 = vadd.xlane.f32.xlu0 %v2290
        %v2296 = vpop.xlane.xlu0 %2295
        %v2297 = vmul.f32 %v2294, %v2015
        %v2298 = vmul.f32 %v2296, %v2015
        %v2299 = vsub.f32 %v2289, %v2297
        %v2300 = vsub.f32 %v2290, %v2298
        %v2301 = vmul.f32 %v2299, %v2299
        %v2302 = vmul.f32 %v2300, %v2300
        %2303 = vadd.xlane.f32.xlu0 %v2301
        %v2304 = vpop.xlane.xlu0 %2303
        %2305 = vadd.xlane.f32.xlu0 %v2302
        %v2306 = vpop.xlane.xlu0 %2305
        %v2307 = vmul.f32 %v2304, %v2015
        %v2308 = vmul.f32 %v2306, %v2015
        %v2309 = vadd.f32 %v2307, 1e-05
        %v2310 = vadd.f32 %v2308, 1e-05
        %v2311 = vrsqrt.pop %v2309
        %v2312 = vrsqrt.pop %v2310
        %v2313 = vmul.f32 %v2299, %v2311
        %v2314 = vmul.f32 %v2300, %v2312
        %v2316 = vlaneseq
        %v2317 = vshrl.u32 %v2316, 7
        %v2318 = vsub.s32 0, %v2317
        %v2319 = vrot.slane %v2291, %v2318
        %v2321 = vmul.f32 %v2313, %v2319
        %v2322 = vmul.f32 %v2314, %v2319
        %v2324 = vlaneseq
        %v2325 = vshrl.u32 %v2324, 7
        %v2326 = vsub.s32 0, %v2325
        %v2327 = vrot.slane %v2292, %v2326
        %v2329 = vadd.f32 %v2321, %v2327
        %v2330 = vadd.f32 %v2322, %v2327
        %2331 = vst [vmem:[%s778] sm:$0xff] %v2329
        %2332 = vst [vmem:[%s778 + $0x8] sm:$0xff] %v2330
        %s2333 = sand.u32 %s412, 1
        %s2334 = scalar_lea.sflag [#allocation4], %s2333
        %s2335 = sand.u32 %s412, 1
        %s2336 = smul.addr %s2335, 16
        %s2337 = scalar_lea.vmem [#allocation29], %s2336
        // Predicated region
        $region157: #{tpu_custom_call.1} parent=87 // pred_check
          %p2338 = pneg %p422
        $region158: #{tpu_custom_call.1} parent=87 // pred_check_branch
          %2340 = sbr.rel (%p2338) target = $region160
        $region159: #{tpu_custom_call.1} parent=87 // pred_region
          %s2342 = ssub.s32 256, 256
          %2343 = vsyncadd %s2334, %s2342
          %s2344 = smul.addr %s42, 2
          %s2345 = smul.addr %s2344, 128
          %s2346 = scalar_lea.hbm %s17, %s2345
          %s2347 = sshll.u32 %s2337, 4
          %s2348 = int_to_ptr.vmem [resolvable:$true] %s2347
          %2353 = dma.vmem_to_hbm [thread:$0]  %s2348, 256, %s2346, %s2334, 128, 128, 8
        $region160: #{tpu_custom_call.1} parent=87 // pred_fallthru
          _
      $region88: #{tpu_custom_call.1} parent=5 // pred_fallthru
        _
      %p2354 = scmp.le.s32.totalorder 2, %s37
      // Predicated region
      $region161: #{tpu_custom_call.1} parent=5 // pred_check
        %p2355 = pneg %p2354
      $region162: #{tpu_custom_call.1} parent=5 // pred_check_branch
        %2357 = sbr.rel (%p2355) target = $region164
      $region163: #{tpu_custom_call.1} parent=5 // pred_region
        %s2358 = ssub.s32 %s37, 2
        // Predicated region
        $region165: #{tpu_custom_call.1} parent=163 // pred_check
          %p2359 = pneg %p428
        $region166: #{tpu_custom_call.1} parent=163 // pred_check_branch
          %2361 = sbr.rel (%p2359) target = $region168
        $region167: #{tpu_custom_call.1} parent=163 // pred_region
          %s2362 = sand.u32 %s413, 1
          %s2363 = scalar_lea.sflag [#allocation4], %s2362
          %s2364 = sand.u32 %s413, 1
          %s2365 = smul.addr %s2364, 16
          %s2366 = scalar_lea.vmem [#allocation29], %s2365
          %2367 = dma.done %s2363, 256
        $region168: #{tpu_custom_call.1} parent=163 // pred_fallthru
          _
      $region164: #{tpu_custom_call.1} parent=5 // pred_fallthru
        _
    $region6: #{tpu_custom_call.1} parent=1 // loop_footer
      %s41 = sadd.s32 1, %s37
    $region7: #{tpu_custom_call.1} parent=1 // loop_footer_branch
      %36 = sbr.rel target = $region3
    $region8: #{tpu_custom_call.1} parent=1 // loop_exit
      _
    %2368 = vsyncpa [#allocation3], 1
    %s2369 = scalar_lea.sflag [#allocation3], 1
    %2370 = vsyncpa %s2369, 1
    %2371 = vsyncpa [#allocation6], 1
    %2372 = vsyncpa [#allocation9], 1
    %2373 = vsyncpa [#allocation12], 1
    %2374 = vsyncpa [#allocation15], 1
    %2375 = vsyncpa [#allocation18], 1
    %2376 = vsyncpa [#allocation21], 1
    %2377 = vsyncpa [#allocation24], 1
    %2378 = vsyncpa [#allocation27], 1
    %2379 = vsyncpa [#allocation4], 1
    %s2380 = scalar_lea.sflag [#allocation4], 1
    %2381 = vsyncpa %s2380, 1

</llo_original>
